<compile_context>
chip_gen: v5e
topology: v5e:2x2
jax: 0.10.0
libtpu: 0.0.40
codegen_flags: <defaults>
</compile_context>

<pallas_src>
import jax
import jax.numpy as jnp
from jax import lax
from jax.experimental import pallas as pl
from jax.experimental.pallas import tpu as pltpu


def _rnn_classifier_kernel(emb_ref, seq_ref, wih_ref, whh_ref, bih_ref,
                           bhn_ref, wfc_ref, bfc_ref, out_ref, gi_ref):
    """Refs:
      emb_ref : (T*B, H)    time-major embeddings, batch padded to 8 sublanes
      seq_ref : (B, 1)      int32 sequence lengths (0 for padding rows)
      wih_ref : (2, H, 3H)  [direction] input->hidden weights, gates r|z|n
      whh_ref : (2, H, 3H)  hidden->hidden weights, gates r|z|n
      bih_ref : (2, 1, 3H)  [b_r(ih+hh folded), b_z(folded), b_ih_n]
      bhn_ref : (2, 1, H)   b_hh_n (applied inside r * (.))
      wfc_ref : (2, H, Opad) [h_backward half, h_forward half] of fc weight
      bfc_ref : (1, Opad)
      out_ref : (B, Opad)
      gi_ref  : (2, T*B, 3H) scratch: hoisted input projections
    """
    TB, H = emb_ref.shape
    B = seq_ref.shape[0]
    T = TB // B
    H2 = 2 * H

    # ---- hoisted input projections (off the serial critical path) ----------
    emb = emb_ref[...]                                       # (T*B, H)
    for d in range(2):                                       # 1 fused matmul / dir
        gi_ref[d, :, :] = (
            jnp.dot(emb, wih_ref[d], preferred_element_type=jnp.float32)
            + bih_ref[d])

    # loop-invariant recurrent weights / biases, held resident
    whh_f = whh_ref[0]                                       # (H, 3H)
    whh_b = whh_ref[1]
    b_hn_f = bhn_ref[0]                                      # (1, H)
    b_hn_b = bhn_ref[1]
    seq = seq_ref[...]                                       # (B, 1) int32

    def gru_step(h, t_idx, d, whh, b_hn):
        """Masked GRU update at time t_idx for direction d (packed semantics)."""
        sl = pl.ds(pl.multiple_of(t_idx * B, B), B)
        gi = gi_ref[d, sl, :]                                # (B, 3H) precomputed
        gh = jnp.dot(h, whh, preferred_element_type=jnp.float32)   # single MXU push
        rz = jax.nn.sigmoid(gi[:, :H2] + gh[:, :H2])         # r|z in one EUP pass
        r = rz[:, :H]
        z = rz[:, H:]
        n = jnp.tanh(gi[:, H2:] + r * (gh[:, H2:] + b_hn))
        h_new = (1.0 - z) * n + z * h
        # pack_padded_sequence: frozen (at h0=0 or last valid state) past length
        return jnp.where(t_idx < seq, h_new, h)

    def body(t, carry):
        hf, hb = carry
        hf = gru_step(hf, t, 0, whh_f, b_hn_f)               # forward: time t
        hb = gru_step(hb, T - 1 - t, 1, whh_b, b_hn_b)       # backward: time T-1-t
        return hf, hb

    h0 = jnp.zeros((B, H), jnp.float32)
    hf, hb = lax.fori_loop(0, T, body, (h0, h0), unroll=True)

    # fc(cat([hidden[-1], hidden[-2]])) == fc([h_backward, h_forward]),
    # done without an explicit concat; lane-dense (B, Opad) store.
    out_ref[...] = (
        jnp.dot(hb, wfc_ref[0], preferred_element_type=jnp.float32)
        + jnp.dot(hf, wfc_ref[1], preferred_element_type=jnp.float32)
        + bfc_ref[...])


def rnn_classifier_forward(params, tokens, seq_lengths):
    """tokens: (B, T) int32. seq_lengths: (B,) int32, sorted descending
    (as pack_padded_sequence with enforce_sorted=True requires)."""
    B, T = tokens.shape
    H = params["w_hh_f"].shape[0]
    O = params["w_fc"].shape[1]

    B_pad = ((B + 7) // 8) * 8          # full sublane tile
    O_pad = ((O + 127) // 128) * 128    # lane-dense output store

    # Embedding gather (tiny; done in JAX) and time-major layout like input.t()
    emb = params["embedding"][tokens.T]                          # (T, B, H)
    emb = jnp.pad(emb, ((0, 0), (0, B_pad - B), (0, 0)))
    emb2d = emb.reshape(T * B_pad, H)

    seq = jnp.pad(seq_lengths.astype(jnp.int32), (0, B_pad - B))[:, None]  # (B_pad,1)

    # Weights already stored as (H_in, 3H) with gate order r|z|n (torch layout,
    # transposed). Stack per direction; fold r/z biases (ih+hh) and keep b_hh_n
    # separate (it lives inside the r * (.) term of the GRU cell).
    wih = jnp.stack([params["w_ih_f"], params["w_ih_b"]])        # (2, H, 3H)
    whh = jnp.stack([params["w_hh_f"], params["w_hh_b"]])        # (2, H, 3H)

    def fold_bias(bih, bhh):                                     # -> (1, 3H)
        return jnp.concatenate(
            [bih[:, :2 * H] + bhh[:, :2 * H], bih[:, 2 * H:]], axis=1)

    bih = jnp.stack([fold_bias(params["b_ih_f"], params["b_hh_f"]),
                     fold_bias(params["b_ih_b"], params["b_hh_b"])])     # (2,1,3H)
    bhn = jnp.stack([params["b_hh_f"][:, 2 * H:],
                     params["b_hh_b"][:, 2 * H:]])                       # (2,1,H)

    # fc: first H rows multiply h_backward (hidden[-1]), last H rows h_forward.
    wfc = params["w_fc"]
    wfc_pad = jnp.zeros((2, H, O_pad), jnp.float32)
    wfc_pad = wfc_pad.at[0, :, :O].set(wfc[:H])
    wfc_pad = wfc_pad.at[1, :, :O].set(wfc[H:])
    bfc_pad = jnp.zeros((1, O_pad), jnp.float32).at[:, :O].set(params["b_fc"])

    vmem = pl.BlockSpec(memory_space=pltpu.MemorySpace.VMEM)
    out = pl.pallas_call(
        _rnn_classifier_kernel,
        out_shape=jax.ShapeDtypeStruct((B_pad, O_pad), jnp.float32),
        in_specs=[vmem] * 8,
        out_specs=vmem,
        scratch_shapes=[pltpu.VMEM((2, T * B_pad, 3 * H), jnp.float32)],
    )(emb2d, seq, wih, whh, bih, bhn, wfc_pad, bfc_pad)

    return out[:B, :O]


def init_params(key, input_size, hidden_size, output_size):
    H, O = hidden_size, output_size
    k = jax.random.split(key, 16)
    s = 1.0 / jnp.sqrt(jnp.float32(H))
    u = lambda kk, shape: jax.random.uniform(kk, shape, jnp.float32, -s, s)
    return {
        "embedding": jax.random.normal(k[0], (input_size, H), jnp.float32),
        # GRU weights stored transposed relative to torch: (H_in, 3H) / (H, 3H)
        "w_ih_f": u(k[1], (H, 3 * H)), "w_hh_f": u(k[2], (H, 3 * H)),
        "b_ih_f": u(k[3], (1, 3 * H)), "b_hh_f": u(k[4], (1, 3 * H)),
        "w_ih_b": u(k[5], (H, 3 * H)), "w_hh_b": u(k[6], (H, 3 * H)),
        "b_ih_b": u(k[7], (1, 3 * H)), "b_hh_b": u(k[8], (1, 3 * H)),
        "w_fc": u(k[9], (2 * H, O)), "b_fc": u(k[10], (1, O)),
    }


def _gru_cell(x, h, w_ih, w_hh, b_ih, b_hh):
    """Reference PyTorch GRU cell (gate order r, z, n; weights transposed)."""
    H = h.shape[-1]
    gi = jnp.dot(x, w_ih, preferred_element_type=jnp.float32) + b_ih
    gh = jnp.dot(h, w_hh, preferred_element_type=jnp.float32) + b_hh
    i_r, i_z, i_n = gi[:, :H], gi[:, H:2 * H], gi[:, 2 * H:]
    h_r, h_z, h_n = gh[:, :H], gh[:, H:2 * H], gh[:, 2 * H:]
    r = jax.nn.sigmoid(i_r + h_r)
    z = jax.nn.sigmoid(i_z + h_z)
    n = jnp.tanh(i_n + r * h_n)
    return (1.0 - z) * n + z * h


def reference_forward(params, tokens, seq_lengths):
    """Pure-JAX reference mirroring torch semantics (silent sanity check)."""
    B, T = tokens.shape
    emb = params["embedding"][tokens.T]                # (T, B, H)
    H = params["w_hh_f"].shape[0]
    hf = jnp.zeros((B, H), jnp.float32)
    hb = jnp.zeros((B, H), jnp.float32)
    for t in range(T):
        m = (t < seq_lengths)[:, None]
        hf = jnp.where(m, _gru_cell(emb[t], hf, params["w_ih_f"], params["w_hh_f"],
                                    params["b_ih_f"], params["b_hh_f"]), hf)
    for t in range(T - 1, -1, -1):
        m = (t < seq_lengths)[:, None]
        hb = jnp.where(m, _gru_cell(emb[t], hb, params["w_ih_b"], params["w_hh_b"],
                                    params["b_ih_b"], params["b_hh_b"]), hb)
    hidden_cat = jnp.concatenate([hb, hf], axis=1)     # cat([hidden[-1], hidden[-2]])
    return hidden_cat @ params["w_fc"] + params["b_fc"]


if __name__ == "__main__":
    input_size = 20      # vocab (e.g. N_CHARS in the tutorial)
    hidden_size = 32
    output_size = 8      # number of classes (countries)
    B, T = 4, 6

    key = jax.random.PRNGKey(0)
    k_param, k_tok = jax.random.split(key)
    params = init_params(k_param, input_size, hidden_size, output_size)

    tokens = jax.random.randint(k_tok, (B, T), 0, input_size, dtype=jnp.int32)
    seq_lengths = jnp.array([6, 5, 3, 2], dtype=jnp.int32)   # sorted descending

    out = jax.block_until_ready(rnn_classifier_forward(params, tokens, seq_lengths))

    ref = reference_forward(params, tokens, seq_lengths)
    assert out.shape == (B, output_size)
    assert jnp.allclose(out, ref, atol=1e-4, rtol=1e-4)

    print("KERNEL_OK")
</pallas_src>

<mosaic_0001>
module attributes {stable_mosaic.version = 11 : i64} {
  func.func @_rnn_classifier_kernel(%arg0: memref<48x32xf32, #tpu.memory_space<vmem>>, %arg1: memref<8x1xi32, #tpu.memory_space<vmem>>, %arg2: memref<2x32x96xf32, #tpu.memory_space<vmem>>, %arg3: memref<2x32x96xf32, #tpu.memory_space<vmem>>, %arg4: memref<2x1x96xf32, #tpu.memory_space<vmem>>, %arg5: memref<2x1x32xf32, #tpu.memory_space<vmem>>, %arg6: memref<2x32x128xf32, #tpu.memory_space<vmem>>, %arg7: memref<1x128xf32, #tpu.memory_space<vmem>>, %arg8: memref<8x128xf32, #tpu.memory_space<vmem>>, %arg9: memref<2x48x96xf32, #tpu.memory_space<vmem>>) attributes {dimension_semantics = [], scalar_prefetch = 0 : i64, scratch_operands = 1 : i64, tpu.core_type = #tpu.core_type<tc>} {
    %c0 = arith.constant 0 : index
    %c0_0 = arith.constant 0 : index
    %0 = vector.load %arg0[%c0, %c0_0] : memref<48x32xf32, #tpu.memory_space<vmem>>, vector<48x32xf32>
    %c0_1 = arith.constant 0 : index
    %c0_2 = arith.constant 0 : index
    %c0_3 = arith.constant 0 : index
    %1 = vector.load %arg2[%c0_1, %c0_2, %c0_3] : memref<2x32x96xf32, #tpu.memory_space<vmem>>, vector<1x32x96xf32>
    %2 = vector.shape_cast %1 : vector<1x32x96xf32> to vector<32x96xf32>
    %cst = arith.constant dense<0.000000e+00> : vector<48x96xf32>
    %3 = tpu.matmul %0, %2, %cst {dimension_numbers = #tpu.dot_dimension_numbers<[1], [0], [0], [1], [0, 0, 1, 1], [], []>} : vector<48x32xf32>, vector<32x96xf32>, vector<48x96xf32> -> vector<48x96xf32>
    %c0_4 = arith.constant 0 : index
    %c0_5 = arith.constant 0 : index
    %c0_6 = arith.constant 0 : index
    %4 = vector.load %arg4[%c0_4, %c0_5, %c0_6] : memref<2x1x96xf32, #tpu.memory_space<vmem>>, vector<1x1x96xf32>
    %5 = vector.shape_cast %4 : vector<1x1x96xf32> to vector<1x96xf32>
    %6 = vector.broadcast %5 : vector<1x96xf32> to vector<48x96xf32>
    %7 = arith.addf %3, %6 : vector<48x96xf32>
    %c0_7 = arith.constant 0 : index
    %c0_8 = arith.constant 0 : index
    %c0_9 = arith.constant 0 : index
    %8 = vector.load %arg9[%c0_7, %c0_8, %c0_9] : memref<2x48x96xf32, #tpu.memory_space<vmem>>, vector<1x48x96xf32>
    %9 = vector.shape_cast %8 : vector<1x48x96xf32> to vector<48x96xf32>
    %10 = vector.shape_cast %7 : vector<48x96xf32> to vector<1x48x96xf32>
    tpu.vector_store %arg9[%c0_7, %c0_8, %c0_9], %10 {strides = array<i32>} : memref<2x48x96xf32, #tpu.memory_space<vmem>>, vector<1x48x96xf32>,
    %c1 = arith.constant 1 : index
    %c0_10 = arith.constant 0 : index
    %c0_11 = arith.constant 0 : index
    %11 = vector.load %arg2[%c1, %c0_10, %c0_11] : memref<2x32x96xf32, #tpu.memory_space<vmem>>, vector<1x32x96xf32>
    %12 = vector.shape_cast %11 : vector<1x32x96xf32> to vector<32x96xf32>
    %cst_12 = arith.constant dense<0.000000e+00> : vector<48x96xf32>
    %13 = tpu.matmul %0, %12, %cst_12 {dimension_numbers = #tpu.dot_dimension_numbers<[1], [0], [0], [1], [0, 0, 1, 1], [], []>} : vector<48x32xf32>, vector<32x96xf32>, vector<48x96xf32> -> vector<48x96xf32>
    %c1_13 = arith.constant 1 : index
    %c0_14 = arith.constant 0 : index
    %c0_15 = arith.constant 0 : index
    %14 = vector.load %arg4[%c1_13, %c0_14, %c0_15] : memref<2x1x96xf32, #tpu.memory_space<vmem>>, vector<1x1x96xf32>
    %15 = vector.shape_cast %14 : vector<1x1x96xf32> to vector<1x96xf32>
    %16 = vector.broadcast %15 : vector<1x96xf32> to vector<48x96xf32>
    %17 = arith.addf %13, %16 : vector<48x96xf32>
    %c1_16 = arith.constant 1 : index
    %c0_17 = arith.constant 0 : index
    %c0_18 = arith.constant 0 : index
    %18 = vector.load %arg9[%c1_16, %c0_17, %c0_18] : memref<2x48x96xf32, #tpu.memory_space<vmem>>, vector<1x48x96xf32>
    %19 = vector.shape_cast %18 : vector<1x48x96xf32> to vector<48x96xf32>
    %20 = vector.shape_cast %17 : vector<48x96xf32> to vector<1x48x96xf32>
    tpu.vector_store %arg9[%c1_16, %c0_17, %c0_18], %20 {strides = array<i32>} : memref<2x48x96xf32, #tpu.memory_space<vmem>>, vector<1x48x96xf32>,
    %c0_19 = arith.constant 0 : index
    %c0_20 = arith.constant 0 : index
    %c0_21 = arith.constant 0 : index
    %21 = vector.load %arg3[%c0_19, %c0_20, %c0_21] : memref<2x32x96xf32, #tpu.memory_space<vmem>>, vector<1x32x96xf32>
    %22 = vector.shape_cast %21 : vector<1x32x96xf32> to vector<32x96xf32>
    %c1_22 = arith.constant 1 : index
    %c0_23 = arith.constant 0 : index
    %c0_24 = arith.constant 0 : index
    %23 = vector.load %arg3[%c1_22, %c0_23, %c0_24] : memref<2x32x96xf32, #tpu.memory_space<vmem>>, vector<1x32x96xf32>
    %24 = vector.shape_cast %23 : vector<1x32x96xf32> to vector<32x96xf32>
    %c0_25 = arith.constant 0 : index
    %c0_26 = arith.constant 0 : index
    %c0_27 = arith.constant 0 : index
    %25 = vector.load %arg5[%c0_25, %c0_26, %c0_27] : memref<2x1x32xf32, #tpu.memory_space<vmem>>, vector<1x1x32xf32>
    %26 = vector.shape_cast %25 : vector<1x1x32xf32> to vector<1x32xf32>
    %c1_28 = arith.constant 1 : index
    %c0_29 = arith.constant 0 : index
    %c0_30 = arith.constant 0 : index
    %27 = vector.load %arg5[%c1_28, %c0_29, %c0_30] : memref<2x1x32xf32, #tpu.memory_space<vmem>>, vector<1x1x32xf32>
    %28 = vector.shape_cast %27 : vector<1x1x32xf32> to vector<1x32xf32>
    %c0_31 = arith.constant 0 : index
    %c0_32 = arith.constant 0 : index
    %29 = vector.load %arg1[%c0_31, %c0_32] : memref<8x1xi32, #tpu.memory_space<vmem>>, vector<8x1xi32>
    %cst_33 = arith.constant 0.000000e+00 : f32
    %30 = vector.broadcast %cst_33 : f32 to vector<8x32xf32>
    %c0_i32 = arith.constant 0 : i32
    %c8_i32 = arith.constant 8 : i32
    %31 = arith.muli %c0_i32, %c8_i32 : i32
    %32 = tpu.assume_multiple %31, 8 : i32
    %c0_34 = arith.constant 0 : index
    %33 = arith.index_cast %32 : i32 to index
    %c0_35 = arith.constant 0 : index
    %34 = vector.load %arg9[%c0_34, %33, %c0_35] : memref<2x48x96xf32, #tpu.memory_space<vmem>>, vector<1x8x96xf32>
    %35 = vector.shape_cast %34 : vector<1x8x96xf32> to vector<8x96xf32>
    %cst_36 = arith.constant dense<0.000000e+00> : vector<8x96xf32>
    %36 = tpu.matmul %30, %22, %cst_36 {dimension_numbers = #tpu.dot_dimension_numbers<[1], [0], [0], [1], [0, 0, 1, 1], [], []>} : vector<8x32xf32>, vector<32x96xf32>, vector<8x96xf32> -> vector<8x96xf32>
    %37 = vector.extract_strided_slice %35 {offsets = [0, 0], sizes = [8, 64], strides = [1, 1]} : vector<8x96xf32> to vector<8x64xf32>
    %38 = vector.extract_strided_slice %36 {offsets = [0, 0], sizes = [8, 64], strides = [1, 1]} : vector<8x96xf32> to vector<8x64xf32>
    %39 = arith.addf %37, %38 : vector<8x64xf32>
    %40 = arith.negf %39 : vector<8x64xf32>
    %41 = math.exp %40 : vector<8x64xf32>
    %cst_37 = arith.constant 1.000000e+00 : f32
    %42 = vector.broadcast %cst_37 : f32 to vector<8x64xf32>
    %43 = arith.addf %42, %41 : vector<8x64xf32>
    %44 = arith.divf %42, %43 : vector<8x64xf32>
    %45 = vector.extract_strided_slice %44 {offsets = [0, 0], sizes = [8, 32], strides = [1, 1]} : vector<8x64xf32> to vector<8x32xf32>
    %46 = vector.extract_strided_slice %44 {offsets = [0, 32], sizes = [8, 32], strides = [1, 1]} : vector<8x64xf32> to vector<8x32xf32>
    %47 = vector.extract_strided_slice %35 {offsets = [0, 64], sizes = [8, 32], strides = [1, 1]} : vector<8x96xf32> to vector<8x32xf32>
    %48 = vector.extract_strided_slice %36 {offsets = [0, 64], sizes = [8, 32], strides = [1, 1]} : vector<8x96xf32> to vector<8x32xf32>
    %49 = vector.broadcast %26 : vector<1x32xf32> to vector<8x32xf32>
    %50 = arith.addf %48, %49 : vector<8x32xf32>
    %51 = arith.mulf %45, %50 : vector<8x32xf32>
    %52 = arith.addf %47, %51 : vector<8x32xf32>
    %53 = math.tanh %52 : vector<8x32xf32>
    %cst_38 = arith.constant 1.000000e+00 : f32
    %54 = vector.broadcast %cst_38 : f32 to vector<8x32xf32>
    %55 = arith.subf %54, %46 : vector<8x32xf32>
    %56 = arith.mulf %55, %53 : vector<8x32xf32>
    %57 = arith.mulf %46, %30 : vector<8x32xf32>
    %58 = arith.addf %56, %57 : vector<8x32xf32>
    %59 = vector.broadcast %c0_i32 : i32 to vector<8x1xi32>
    %60 = arith.cmpi slt, %59, %29 : vector<8x1xi32>
    %61 = vector.shape_cast %60 : vector<8x1xi1> to vector<8x1xi1>
    %62 = vector.broadcast %61 : vector<8x1xi1> to vector<8x32xi1>
    %63 = arith.select %62, %58, %30 : vector<8x32xi1>, vector<8x32xf32>
    %c5_i32 = arith.constant 5 : i32
    %64 = arith.subi %c5_i32, %c0_i32 : i32
    %c8_i32_39 = arith.constant 8 : i32
    %65 = arith.muli %64, %c8_i32_39 : i32
    %66 = tpu.assume_multiple %65, 8 : i32
    %c1_40 = arith.constant 1 : index
    %67 = arith.index_cast %66 : i32 to index
    %c0_41 = arith.constant 0 : index
    %68 = vector.load %arg9[%c1_40, %67, %c0_41] : memref<2x48x96xf32, #tpu.memory_space<vmem>>, vector<1x8x96xf32>
    %69 = vector.shape_cast %68 : vector<1x8x96xf32> to vector<8x96xf32>
    %cst_42 = arith.constant dense<0.000000e+00> : vector<8x96xf32>
    %70 = tpu.matmul %30, %24, %cst_42 {dimension_numbers = #tpu.dot_dimension_numbers<[1], [0], [0], [1], [0, 0, 1, 1], [], []>} : vector<8x32xf32>, vector<32x96xf32>, vector<8x96xf32> -> vector<8x96xf32>
    %71 = vector.extract_strided_slice %69 {offsets = [0, 0], sizes = [8, 64], strides = [1, 1]} : vector<8x96xf32> to vector<8x64xf32>
    %72 = vector.extract_strided_slice %70 {offsets = [0, 0], sizes = [8, 64], strides = [1, 1]} : vector<8x96xf32> to vector<8x64xf32>
    %73 = arith.addf %71, %72 : vector<8x64xf32>
    %74 = arith.negf %73 : vector<8x64xf32>
    %75 = math.exp %74 : vector<8x64xf32>
    %cst_43 = arith.constant 1.000000e+00 : f32
    %76 = vector.broadcast %cst_43 : f32 to vector<8x64xf32>
    %77 = arith.addf %76, %75 : vector<8x64xf32>
    %78 = arith.divf %76, %77 : vector<8x64xf32>
    %79 = vector.extract_strided_slice %78 {offsets = [0, 0], sizes = [8, 32], strides = [1, 1]} : vector<8x64xf32> to vector<8x32xf32>
    %80 = vector.extract_strided_slice %78 {offsets = [0, 32], sizes = [8, 32], strides = [1, 1]} : vector<8x64xf32> to vector<8x32xf32>
    %81 = vector.extract_strided_slice %69 {offsets = [0, 64], sizes = [8, 32], strides = [1, 1]} : vector<8x96xf32> to vector<8x32xf32>
    %82 = vector.extract_strided_slice %70 {offsets = [0, 64], sizes = [8, 32], strides = [1, 1]} : vector<8x96xf32> to vector<8x32xf32>
    %83 = vector.broadcast %28 : vector<1x32xf32> to vector<8x32xf32>
    %84 = arith.addf %82, %83 : vector<8x32xf32>
    %85 = arith.mulf %79, %84 : vector<8x32xf32>
    %86 = arith.addf %81, %85 : vector<8x32xf32>
    %87 = math.tanh %86 : vector<8x32xf32>
    %cst_44 = arith.constant 1.000000e+00 : f32
    %88 = vector.broadcast %cst_44 : f32 to vector<8x32xf32>
    %89 = arith.subf %88, %80 : vector<8x32xf32>
    %90 = arith.mulf %89, %87 : vector<8x32xf32>
    %91 = arith.mulf %80, %30 : vector<8x32xf32>
    %92 = arith.addf %90, %91 : vector<8x32xf32>
    %93 = vector.broadcast %64 : i32 to vector<8x1xi32>
    %94 = arith.cmpi slt, %93, %29 : vector<8x1xi32>
    %95 = vector.shape_cast %94 : vector<8x1xi1> to vector<8x1xi1>
    %96 = vector.broadcast %95 : vector<8x1xi1> to vector<8x32xi1>
    %97 = arith.select %96, %92, %30 : vector<8x32xi1>, vector<8x32xf32>
    %c1_i32 = arith.constant 1 : i32
    %c8_i32_45 = arith.constant 8 : i32
    %98 = arith.muli %c1_i32, %c8_i32_45 : i32
    %99 = tpu.assume_multiple %98, 8 : i32
    %c0_46 = arith.constant 0 : index
    %100 = arith.index_cast %99 : i32 to index
    %c0_47 = arith.constant 0 : index
    %101 = vector.load %arg9[%c0_46, %100, %c0_47] : memref<2x48x96xf32, #tpu.memory_space<vmem>>, vector<1x8x96xf32>
    %102 = vector.shape_cast %101 : vector<1x8x96xf32> to vector<8x96xf32>
    %cst_48 = arith.constant dense<0.000000e+00> : vector<8x96xf32>
    %103 = tpu.matmul %63, %22, %cst_48 {dimension_numbers = #tpu.dot_dimension_numbers<[1], [0], [0], [1], [0, 0, 1, 1], [], []>} : vector<8x32xf32>, vector<32x96xf32>, vector<8x96xf32> -> vector<8x96xf32>
    %104 = vector.extract_strided_slice %102 {offsets = [0, 0], sizes = [8, 64], strides = [1, 1]} : vector<8x96xf32> to vector<8x64xf32>
    %105 = vector.extract_strided_slice %103 {offsets = [0, 0], sizes = [8, 64], strides = [1, 1]} : vector<8x96xf32> to vector<8x64xf32>
    %106 = arith.addf %104, %105 : vector<8x64xf32>
    %107 = arith.negf %106 : vector<8x64xf32>
    %108 = math.exp %107 : vector<8x64xf32>
    %cst_49 = arith.constant 1.000000e+00 : f32
    %109 = vector.broadcast %cst_49 : f32 to vector<8x64xf32>
    %110 = arith.addf %109, %108 : vector<8x64xf32>
    %111 = arith.divf %109, %110 : vector<8x64xf32>
    %112 = vector.extract_strided_slice %111 {offsets = [0, 0], sizes = [8, 32], strides = [1, 1]} : vector<8x64xf32> to vector<8x32xf32>
    %113 = vector.extract_strided_slice %111 {offsets = [0, 32], sizes = [8, 32], strides = [1, 1]} : vector<8x64xf32> to vector<8x32xf32>
    %114 = vector.extract_strided_slice %102 {offsets = [0, 64], sizes = [8, 32], strides = [1, 1]} : vector<8x96xf32> to vector<8x32xf32>
    %115 = vector.extract_strided_slice %103 {offsets = [0, 64], sizes = [8, 32], strides = [1, 1]} : vector<8x96xf32> to vector<8x32xf32>
    %116 = vector.broadcast %26 : vector<1x32xf32> to vector<8x32xf32>
    %117 = arith.addf %115, %116 : vector<8x32xf32>
    %118 = arith.mulf %112, %117 : vector<8x32xf32>
    %119 = arith.addf %114, %118 : vector<8x32xf32>
    %120 = math.tanh %119 : vector<8x32xf32>
    %cst_50 = arith.constant 1.000000e+00 : f32
    %121 = vector.broadcast %cst_50 : f32 to vector<8x32xf32>
    %122 = arith.subf %121, %113 : vector<8x32xf32>
    %123 = arith.mulf %122, %120 : vector<8x32xf32>
    %124 = arith.mulf %113, %63 : vector<8x32xf32>
    %125 = arith.addf %123, %124 : vector<8x32xf32>
    %126 = vector.broadcast %c1_i32 : i32 to vector<8x1xi32>
    %127 = arith.cmpi slt, %126, %29 : vector<8x1xi32>
    %128 = vector.shape_cast %127 : vector<8x1xi1> to vector<8x1xi1>
    %129 = vector.broadcast %128 : vector<8x1xi1> to vector<8x32xi1>
    %130 = arith.select %129, %125, %63 : vector<8x32xi1>, vector<8x32xf32>
    %c5_i32_51 = arith.constant 5 : i32
    %131 = arith.subi %c5_i32_51, %c1_i32 : i32
    %c8_i32_52 = arith.constant 8 : i32
    %132 = arith.muli %131, %c8_i32_52 : i32
    %133 = tpu.assume_multiple %132, 8 : i32
    %c1_53 = arith.constant 1 : index
    %134 = arith.index_cast %133 : i32 to index
    %c0_54 = arith.constant 0 : index
    %135 = vector.load %arg9[%c1_53, %134, %c0_54] : memref<2x48x96xf32, #tpu.memory_space<vmem>>, vector<1x8x96xf32>
    %136 = vector.shape_cast %135 : vector<1x8x96xf32> to vector<8x96xf32>
    %cst_55 = arith.constant dense<0.000000e+00> : vector<8x96xf32>
    %137 = tpu.matmul %97, %24, %cst_55 {dimension_numbers = #tpu.dot_dimension_numbers<[1], [0], [0], [1], [0, 0, 1, 1], [], []>} : vector<8x32xf32>, vector<32x96xf32>, vector<8x96xf32> -> vector<8x96xf32>
    %138 = vector.extract_strided_slice %136 {offsets = [0, 0], sizes = [8, 64], strides = [1, 1]} : vector<8x96xf32> to vector<8x64xf32>
    %139 = vector.extract_strided_slice %137 {offsets = [0, 0], sizes = [8, 64], strides = [1, 1]} : vector<8x96xf32> to vector<8x64xf32>
    %140 = arith.addf %138, %139 : vector<8x64xf32>
    %141 = arith.negf %140 : vector<8x64xf32>
    %142 = math.exp %141 : vector<8x64xf32>
    %cst_56 = arith.constant 1.000000e+00 : f32
    %143 = vector.broadcast %cst_56 : f32 to vector<8x64xf32>
    %144 = arith.addf %143, %142 : vector<8x64xf32>
    %145 = arith.divf %143, %144 : vector<8x64xf32>
    %146 = vector.extract_strided_slice %145 {offsets = [0, 0], sizes = [8, 32], strides = [1, 1]} : vector<8x64xf32> to vector<8x32xf32>
    %147 = vector.extract_strided_slice %145 {offsets = [0, 32], sizes = [8, 32], strides = [1, 1]} : vector<8x64xf32> to vector<8x32xf32>
    %148 = vector.extract_strided_slice %136 {offsets = [0, 64], sizes = [8, 32], strides = [1, 1]} : vector<8x96xf32> to vector<8x32xf32>
    %149 = vector.extract_strided_slice %137 {offsets = [0, 64], sizes = [8, 32], strides = [1, 1]} : vector<8x96xf32> to vector<8x32xf32>
    %150 = vector.broadcast %28 : vector<1x32xf32> to vector<8x32xf32>
    %151 = arith.addf %149, %150 : vector<8x32xf32>
    %152 = arith.mulf %146, %151 : vector<8x32xf32>
    %153 = arith.addf %148, %152 : vector<8x32xf32>
    %154 = math.tanh %153 : vector<8x32xf32>
    %cst_57 = arith.constant 1.000000e+00 : f32
    %155 = vector.broadcast %cst_57 : f32 to vector<8x32xf32>
    %156 = arith.subf %155, %147 : vector<8x32xf32>
    %157 = arith.mulf %156, %154 : vector<8x32xf32>
    %158 = arith.mulf %147, %97 : vector<8x32xf32>
    %159 = arith.addf %157, %158 : vector<8x32xf32>
    %160 = vector.broadcast %131 : i32 to vector<8x1xi32>
    %161 = arith.cmpi slt, %160, %29 : vector<8x1xi32>
    %162 = vector.shape_cast %161 : vector<8x1xi1> to vector<8x1xi1>
    %163 = vector.broadcast %162 : vector<8x1xi1> to vector<8x32xi1>
    %164 = arith.select %163, %159, %97 : vector<8x32xi1>, vector<8x32xf32>
    %c2_i32 = arith.constant 2 : i32
    %c8_i32_58 = arith.constant 8 : i32
    %165 = arith.muli %c2_i32, %c8_i32_58 : i32
    %166 = tpu.assume_multiple %165, 8 : i32
    %c0_59 = arith.constant 0 : index
    %167 = arith.index_cast %166 : i32 to index
    %c0_60 = arith.constant 0 : index
    %168 = vector.load %arg9[%c0_59, %167, %c0_60] : memref<2x48x96xf32, #tpu.memory_space<vmem>>, vector<1x8x96xf32>
    %169 = vector.shape_cast %168 : vector<1x8x96xf32> to vector<8x96xf32>
    %cst_61 = arith.constant dense<0.000000e+00> : vector<8x96xf32>
    %170 = tpu.matmul %130, %22, %cst_61 {dimension_numbers = #tpu.dot_dimension_numbers<[1], [0], [0], [1], [0, 0, 1, 1], [], []>} : vector<8x32xf32>, vector<32x96xf32>, vector<8x96xf32> -> vector<8x96xf32>
    %171 = vector.extract_strided_slice %169 {offsets = [0, 0], sizes = [8, 64], strides = [1, 1]} : vector<8x96xf32> to vector<8x64xf32>
    %172 = vector.extract_strided_slice %170 {offsets = [0, 0], sizes = [8, 64], strides = [1, 1]} : vector<8x96xf32> to vector<8x64xf32>
    %173 = arith.addf %171, %172 : vector<8x64xf32>
    %174 = arith.negf %173 : vector<8x64xf32>
    %175 = math.exp %174 : vector<8x64xf32>
    %cst_62 = arith.constant 1.000000e+00 : f32
    %176 = vector.broadcast %cst_62 : f32 to vector<8x64xf32>
    %177 = arith.addf %176, %175 : vector<8x64xf32>
    %178 = arith.divf %176, %177 : vector<8x64xf32>
    %179 = vector.extract_strided_slice %178 {offsets = [0, 0], sizes = [8, 32], strides = [1, 1]} : vector<8x64xf32> to vector<8x32xf32>
    %180 = vector.extract_strided_slice %178 {offsets = [0, 32], sizes = [8, 32], strides = [1, 1]} : vector<8x64xf32> to vector<8x32xf32>
    %181 = vector.extract_strided_slice %169 {offsets = [0, 64], sizes = [8, 32], strides = [1, 1]} : vector<8x96xf32> to vector<8x32xf32>
    %182 = vector.extract_strided_slice %170 {offsets = [0, 64], sizes = [8, 32], strides = [1, 1]} : vector<8x96xf32> to vector<8x32xf32>
    %183 = vector.broadcast %26 : vector<1x32xf32> to vector<8x32xf32>
    %184 = arith.addf %182, %183 : vector<8x32xf32>
    %185 = arith.mulf %179, %184 : vector<8x32xf32>
    %186 = arith.addf %181, %185 : vector<8x32xf32>
    %187 = math.tanh %186 : vector<8x32xf32>
    %cst_63 = arith.constant 1.000000e+00 : f32
    %188 = vector.broadcast %cst_63 : f32 to vector<8x32xf32>
    %189 = arith.subf %188, %180 : vector<8x32xf32>
    %190 = arith.mulf %189, %187 : vector<8x32xf32>
    %191 = arith.mulf %180, %130 : vector<8x32xf32>
    %192 = arith.addf %190, %191 : vector<8x32xf32>
    %193 = vector.broadcast %c2_i32 : i32 to vector<8x1xi32>
    %194 = arith.cmpi slt, %193, %29 : vector<8x1xi32>
    %195 = vector.shape_cast %194 : vector<8x1xi1> to vector<8x1xi1>
    %196 = vector.broadcast %195 : vector<8x1xi1> to vector<8x32xi1>
    %197 = arith.select %196, %192, %130 : vector<8x32xi1>, vector<8x32xf32>
    %c5_i32_64 = arith.constant 5 : i32
    %198 = arith.subi %c5_i32_64, %c2_i32 : i32
    %c8_i32_65 = arith.constant 8 : i32
    %199 = arith.muli %198, %c8_i32_65 : i32
    %200 = tpu.assume_multiple %199, 8 : i32
    %c1_66 = arith.constant 1 : index
    %201 = arith.index_cast %200 : i32 to index
    %c0_67 = arith.constant 0 : index
    %202 = vector.load %arg9[%c1_66, %201, %c0_67] : memref<2x48x96xf32, #tpu.memory_space<vmem>>, vector<1x8x96xf32>
    %203 = vector.shape_cast %202 : vector<1x8x96xf32> to vector<8x96xf32>
    %cst_68 = arith.constant dense<0.000000e+00> : vector<8x96xf32>
    %204 = tpu.matmul %164, %24, %cst_68 {dimension_numbers = #tpu.dot_dimension_numbers<[1], [0], [0], [1], [0, 0, 1, 1], [], []>} : vector<8x32xf32>, vector<32x96xf32>, vector<8x96xf32> -> vector<8x96xf32>
    %205 = vector.extract_strided_slice %203 {offsets = [0, 0], sizes = [8, 64], strides = [1, 1]} : vector<8x96xf32> to vector<8x64xf32>
    %206 = vector.extract_strided_slice %204 {offsets = [0, 0], sizes = [8, 64], strides = [1, 1]} : vector<8x96xf32> to vector<8x64xf32>
    %207 = arith.addf %205, %206 : vector<8x64xf32>
    %208 = arith.negf %207 : vector<8x64xf32>
    %209 = math.exp %208 : vector<8x64xf32>
    %cst_69 = arith.constant 1.000000e+00 : f32
    %210 = vector.broadcast %cst_69 : f32 to vector<8x64xf32>
    %211 = arith.addf %210, %209 : vector<8x64xf32>
    %212 = arith.divf %210, %211 : vector<8x64xf32>
    %213 = vector.extract_strided_slice %212 {offsets = [0, 0], sizes = [8, 32], strides = [1, 1]} : vector<8x64xf32> to vector<8x32xf32>
    %214 = vector.extract_strided_slice %212 {offsets = [0, 32], sizes = [8, 32], strides = [1, 1]} : vector<8x64xf32> to vector<8x32xf32>
    %215 = vector.extract_strided_slice %203 {offsets = [0, 64], sizes = [8, 32], strides = [1, 1]} : vector<8x96xf32> to vector<8x32xf32>
    %216 = vector.extract_strided_slice %204 {offsets = [0, 64], sizes = [8, 32], strides = [1, 1]} : vector<8x96xf32> to vector<8x32xf32>
    %217 = vector.broadcast %28 : vector<1x32xf32> to vector<8x32xf32>
    %218 = arith.addf %216, %217 : vector<8x32xf32>
    %219 = arith.mulf %213, %218 : vector<8x32xf32>
    %220 = arith.addf %215, %219 : vector<8x32xf32>
    %221 = math.tanh %220 : vector<8x32xf32>
    %cst_70 = arith.constant 1.000000e+00 : f32
    %222 = vector.broadcast %cst_70 : f32 to vector<8x32xf32>
    %223 = arith.subf %222, %214 : vector<8x32xf32>
    %224 = arith.mulf %223, %221 : vector<8x32xf32>
    %225 = arith.mulf %214, %164 : vector<8x32xf32>
    %226 = arith.addf %224, %225 : vector<8x32xf32>
    %227 = vector.broadcast %198 : i32 to vector<8x1xi32>
    %228 = arith.cmpi slt, %227, %29 : vector<8x1xi32>
    %229 = vector.shape_cast %228 : vector<8x1xi1> to vector<8x1xi1>
    %230 = vector.broadcast %229 : vector<8x1xi1> to vector<8x32xi1>
    %231 = arith.select %230, %226, %164 : vector<8x32xi1>, vector<8x32xf32>
    %c3_i32 = arith.constant 3 : i32
    %c8_i32_71 = arith.constant 8 : i32
    %232 = arith.muli %c3_i32, %c8_i32_71 : i32
    %233 = tpu.assume_multiple %232, 8 : i32
    %c0_72 = arith.constant 0 : index
    %234 = arith.index_cast %233 : i32 to index
    %c0_73 = arith.constant 0 : index
    %235 = vector.load %arg9[%c0_72, %234, %c0_73] : memref<2x48x96xf32, #tpu.memory_space<vmem>>, vector<1x8x96xf32>
    %236 = vector.shape_cast %235 : vector<1x8x96xf32> to vector<8x96xf32>
    %cst_74 = arith.constant dense<0.000000e+00> : vector<8x96xf32>
    %237 = tpu.matmul %197, %22, %cst_74 {dimension_numbers = #tpu.dot_dimension_numbers<[1], [0], [0], [1], [0, 0, 1, 1], [], []>} : vector<8x32xf32>, vector<32x96xf32>, vector<8x96xf32> -> vector<8x96xf32>
    %238 = vector.extract_strided_slice %236 {offsets = [0, 0], sizes = [8, 64], strides = [1, 1]} : vector<8x96xf32> to vector<8x64xf32>
    %239 = vector.extract_strided_slice %237 {offsets = [0, 0], sizes = [8, 64], strides = [1, 1]} : vector<8x96xf32> to vector<8x64xf32>
    %240 = arith.addf %238, %239 : vector<8x64xf32>
    %241 = arith.negf %240 : vector<8x64xf32>
    %242 = math.exp %241 : vector<8x64xf32>
    %cst_75 = arith.constant 1.000000e+00 : f32
    %243 = vector.broadcast %cst_75 : f32 to vector<8x64xf32>
    %244 = arith.addf %243, %242 : vector<8x64xf32>
    %245 = arith.divf %243, %244 : vector<8x64xf32>
    %246 = vector.extract_strided_slice %245 {offsets = [0, 0], sizes = [8, 32], strides = [1, 1]} : vector<8x64xf32> to vector<8x32xf32>
    %247 = vector.extract_strided_slice %245 {offsets = [0, 32], sizes = [8, 32], strides = [1, 1]} : vector<8x64xf32> to vector<8x32xf32>
    %248 = vector.extract_strided_slice %236 {offsets = [0, 64], sizes = [8, 32], strides = [1, 1]} : vector<8x96xf32> to vector<8x32xf32>
    %249 = vector.extract_strided_slice %237 {offsets = [0, 64], sizes = [8, 32], strides = [1, 1]} : vector<8x96xf32> to vector<8x32xf32>
    %250 = vector.broadcast %26 : vector<1x32xf32> to vector<8x32xf32>
    %251 = arith.addf %249, %250 : vector<8x32xf32>
    %252 = arith.mulf %246, %251 : vector<8x32xf32>
    %253 = arith.addf %248, %252 : vector<8x32xf32>
    %254 = math.tanh %253 : vector<8x32xf32>
    %cst_76 = arith.constant 1.000000e+00 : f32
    %255 = vector.broadcast %cst_76 : f32 to vector<8x32xf32>
    %256 = arith.subf %255, %247 : vector<8x32xf32>
    %257 = arith.mulf %256, %254 : vector<8x32xf32>
    %258 = arith.mulf %247, %197 : vector<8x32xf32>
    %259 = arith.addf %257, %258 : vector<8x32xf32>
    %260 = vector.broadcast %c3_i32 : i32 to vector<8x1xi32>
    %261 = arith.cmpi slt, %260, %29 : vector<8x1xi32>
    %262 = vector.shape_cast %261 : vector<8x1xi1> to vector<8x1xi1>
    %263 = vector.broadcast %262 : vector<8x1xi1> to vector<8x32xi1>
    %264 = arith.select %263, %259, %197 : vector<8x32xi1>, vector<8x32xf32>
    %c5_i32_77 = arith.constant 5 : i32
    %265 = arith.subi %c5_i32_77, %c3_i32 : i32
    %c8_i32_78 = arith.constant 8 : i32
    %266 = arith.muli %265, %c8_i32_78 : i32
    %267 = tpu.assume_multiple %266, 8 : i32
    %c1_79 = arith.constant 1 : index
    %268 = arith.index_cast %267 : i32 to index
    %c0_80 = arith.constant 0 : index
    %269 = vector.load %arg9[%c1_79, %268, %c0_80] : memref<2x48x96xf32, #tpu.memory_space<vmem>>, vector<1x8x96xf32>
    %270 = vector.shape_cast %269 : vector<1x8x96xf32> to vector<8x96xf32>
    %cst_81 = arith.constant dense<0.000000e+00> : vector<8x96xf32>
    %271 = tpu.matmul %231, %24, %cst_81 {dimension_numbers = #tpu.dot_dimension_numbers<[1], [0], [0], [1], [0, 0, 1, 1], [], []>} : vector<8x32xf32>, vector<32x96xf32>, vector<8x96xf32> -> vector<8x96xf32>
    %272 = vector.extract_strided_slice %270 {offsets = [0, 0], sizes = [8, 64], strides = [1, 1]} : vector<8x96xf32> to vector<8x64xf32>
    %273 = vector.extract_strided_slice %271 {offsets = [0, 0], sizes = [8, 64], strides = [1, 1]} : vector<8x96xf32> to vector<8x64xf32>
    %274 = arith.addf %272, %273 : vector<8x64xf32>
    %275 = arith.negf %274 : vector<8x64xf32>
    %276 = math.exp %275 : vector<8x64xf32>
    %cst_82 = arith.constant 1.000000e+00 : f32
    %277 = vector.broadcast %cst_82 : f32 to vector<8x64xf32>
    %278 = arith.addf %277, %276 : vector<8x64xf32>
    %279 = arith.divf %277, %278 : vector<8x64xf32>
    %280 = vector.extract_strided_slice %279 {offsets = [0, 0], sizes = [8, 32], strides = [1, 1]} : vector<8x64xf32> to vector<8x32xf32>
    %281 = vector.extract_strided_slice %279 {offsets = [0, 32], sizes = [8, 32], strides = [1, 1]} : vector<8x64xf32> to vector<8x32xf32>
    %282 = vector.extract_strided_slice %270 {offsets = [0, 64], sizes = [8, 32], strides = [1, 1]} : vector<8x96xf32> to vector<8x32xf32>
    %283 = vector.extract_strided_slice %271 {offsets = [0, 64], sizes = [8, 32], strides = [1, 1]} : vector<8x96xf32> to vector<8x32xf32>
    %284 = vector.broadcast %28 : vector<1x32xf32> to vector<8x32xf32>
    %285 = arith.addf %283, %284 : vector<8x32xf32>
    %286 = arith.mulf %280, %285 : vector<8x32xf32>
    %287 = arith.addf %282, %286 : vector<8x32xf32>
    %288 = math.tanh %287 : vector<8x32xf32>
    %cst_83 = arith.constant 1.000000e+00 : f32
    %289 = vector.broadcast %cst_83 : f32 to vector<8x32xf32>
    %290 = arith.subf %289, %281 : vector<8x32xf32>
    %291 = arith.mulf %290, %288 : vector<8x32xf32>
    %292 = arith.mulf %281, %231 : vector<8x32xf32>
    %293 = arith.addf %291, %292 : vector<8x32xf32>
    %294 = vector.broadcast %265 : i32 to vector<8x1xi32>
    %295 = arith.cmpi slt, %294, %29 : vector<8x1xi32>
    %296 = vector.shape_cast %295 : vector<8x1xi1> to vector<8x1xi1>
    %297 = vector.broadcast %296 : vector<8x1xi1> to vector<8x32xi1>
    %298 = arith.select %297, %293, %231 : vector<8x32xi1>, vector<8x32xf32>
    %c4_i32 = arith.constant 4 : i32
    %c8_i32_84 = arith.constant 8 : i32
    %299 = arith.muli %c4_i32, %c8_i32_84 : i32
    %300 = tpu.assume_multiple %299, 8 : i32
    %c0_85 = arith.constant 0 : index
    %301 = arith.index_cast %300 : i32 to index
    %c0_86 = arith.constant 0 : index
    %302 = vector.load %arg9[%c0_85, %301, %c0_86] : memref<2x48x96xf32, #tpu.memory_space<vmem>>, vector<1x8x96xf32>
    %303 = vector.shape_cast %302 : vector<1x8x96xf32> to vector<8x96xf32>
    %cst_87 = arith.constant dense<0.000000e+00> : vector<8x96xf32>
    %304 = tpu.matmul %264, %22, %cst_87 {dimension_numbers = #tpu.dot_dimension_numbers<[1], [0], [0], [1], [0, 0, 1, 1], [], []>} : vector<8x32xf32>, vector<32x96xf32>, vector<8x96xf32> -> vector<8x96xf32>
    %305 = vector.extract_strided_slice %303 {offsets = [0, 0], sizes = [8, 64], strides = [1, 1]} : vector<8x96xf32> to vector<8x64xf32>
    %306 = vector.extract_strided_slice %304 {offsets = [0, 0], sizes = [8, 64], strides = [1, 1]} : vector<8x96xf32> to vector<8x64xf32>
    %307 = arith.addf %305, %306 : vector<8x64xf32>
    %308 = arith.negf %307 : vector<8x64xf32>
    %309 = math.exp %308 : vector<8x64xf32>
    %cst_88 = arith.constant 1.000000e+00 : f32
    %310 = vector.broadcast %cst_88 : f32 to vector<8x64xf32>
    %311 = arith.addf %310, %309 : vector<8x64xf32>
    %312 = arith.divf %310, %311 : vector<8x64xf32>
    %313 = vector.extract_strided_slice %312 {offsets = [0, 0], sizes = [8, 32], strides = [1, 1]} : vector<8x64xf32> to vector<8x32xf32>
    %314 = vector.extract_strided_slice %312 {offsets = [0, 32], sizes = [8, 32], strides = [1, 1]} : vector<8x64xf32> to vector<8x32xf32>
    %315 = vector.extract_strided_slice %303 {offsets = [0, 64], sizes = [8, 32], strides = [1, 1]} : vector<8x96xf32> to vector<8x32xf32>
    %316 = vector.extract_strided_slice %304 {offsets = [0, 64], sizes = [8, 32], strides = [1, 1]} : vector<8x96xf32> to vector<8x32xf32>
    %317 = vector.broadcast %26 : vector<1x32xf32> to vector<8x32xf32>
    %318 = arith.addf %316, %317 : vector<8x32xf32>
    %319 = arith.mulf %313, %318 : vector<8x32xf32>
    %320 = arith.addf %315, %319 : vector<8x32xf32>
    %321 = math.tanh %320 : vector<8x32xf32>
    %cst_89 = arith.constant 1.000000e+00 : f32
    %322 = vector.broadcast %cst_89 : f32 to vector<8x32xf32>
    %323 = arith.subf %322, %314 : vector<8x32xf32>
    %324 = arith.mulf %323, %321 : vector<8x32xf32>
    %325 = arith.mulf %314, %264 : vector<8x32xf32>
    %326 = arith.addf %324, %325 : vector<8x32xf32>
    %327 = vector.broadcast %c4_i32 : i32 to vector<8x1xi32>
    %328 = arith.cmpi slt, %327, %29 : vector<8x1xi32>
    %329 = vector.shape_cast %328 : vector<8x1xi1> to vector<8x1xi1>
    %330 = vector.broadcast %329 : vector<8x1xi1> to vector<8x32xi1>
    %331 = arith.select %330, %326, %264 : vector<8x32xi1>, vector<8x32xf32>
    %c5_i32_90 = arith.constant 5 : i32
    %332 = arith.subi %c5_i32_90, %c4_i32 : i32
    %c8_i32_91 = arith.constant 8 : i32
    %333 = arith.muli %332, %c8_i32_91 : i32
    %334 = tpu.assume_multiple %333, 8 : i32
    %c1_92 = arith.constant 1 : index
    %335 = arith.index_cast %334 : i32 to index
    %c0_93 = arith.constant 0 : index
    %336 = vector.load %arg9[%c1_92, %335, %c0_93] : memref<2x48x96xf32, #tpu.memory_space<vmem>>, vector<1x8x96xf32>
    %337 = vector.shape_cast %336 : vector<1x8x96xf32> to vector<8x96xf32>
    %cst_94 = arith.constant dense<0.000000e+00> : vector<8x96xf32>
    %338 = tpu.matmul %298, %24, %cst_94 {dimension_numbers = #tpu.dot_dimension_numbers<[1], [0], [0], [1], [0, 0, 1, 1], [], []>} : vector<8x32xf32>, vector<32x96xf32>, vector<8x96xf32> -> vector<8x96xf32>
    %339 = vector.extract_strided_slice %337 {offsets = [0, 0], sizes = [8, 64], strides = [1, 1]} : vector<8x96xf32> to vector<8x64xf32>
    %340 = vector.extract_strided_slice %338 {offsets = [0, 0], sizes = [8, 64], strides = [1, 1]} : vector<8x96xf32> to vector<8x64xf32>
    %341 = arith.addf %339, %340 : vector<8x64xf32>
    %342 = arith.negf %341 : vector<8x64xf32>
    %343 = math.exp %342 : vector<8x64xf32>
    %cst_95 = arith.constant 1.000000e+00 : f32
    %344 = vector.broadcast %cst_95 : f32 to vector<8x64xf32>
    %345 = arith.addf %344, %343 : vector<8x64xf32>
    %346 = arith.divf %344, %345 : vector<8x64xf32>
    %347 = vector.extract_strided_slice %346 {offsets = [0, 0], sizes = [8, 32], strides = [1, 1]} : vector<8x64xf32> to vector<8x32xf32>
    %348 = vector.extract_strided_slice %346 {offsets = [0, 32], sizes = [8, 32], strides = [1, 1]} : vector<8x64xf32> to vector<8x32xf32>
    %349 = vector.extract_strided_slice %337 {offsets = [0, 64], sizes = [8, 32], strides = [1, 1]} : vector<8x96xf32> to vector<8x32xf32>
    %350 = vector.extract_strided_slice %338 {offsets = [0, 64], sizes = [8, 32], strides = [1, 1]} : vector<8x96xf32> to vector<8x32xf32>
    %351 = vector.broadcast %28 : vector<1x32xf32> to vector<8x32xf32>
    %352 = arith.addf %350, %351 : vector<8x32xf32>
    %353 = arith.mulf %347, %352 : vector<8x32xf32>
    %354 = arith.addf %349, %353 : vector<8x32xf32>
    %355 = math.tanh %354 : vector<8x32xf32>
    %cst_96 = arith.constant 1.000000e+00 : f32
    %356 = vector.broadcast %cst_96 : f32 to vector<8x32xf32>
    %357 = arith.subf %356, %348 : vector<8x32xf32>
    %358 = arith.mulf %357, %355 : vector<8x32xf32>
    %359 = arith.mulf %348, %298 : vector<8x32xf32>
    %360 = arith.addf %358, %359 : vector<8x32xf32>
    %361 = vector.broadcast %332 : i32 to vector<8x1xi32>
    %362 = arith.cmpi slt, %361, %29 : vector<8x1xi32>
    %363 = vector.shape_cast %362 : vector<8x1xi1> to vector<8x1xi1>
    %364 = vector.broadcast %363 : vector<8x1xi1> to vector<8x32xi1>
    %365 = arith.select %364, %360, %298 : vector<8x32xi1>, vector<8x32xf32>
    %c5_i32_97 = arith.constant 5 : i32
    %c8_i32_98 = arith.constant 8 : i32
    %366 = arith.muli %c5_i32_97, %c8_i32_98 : i32
    %367 = tpu.assume_multiple %366, 8 : i32
    %c0_99 = arith.constant 0 : index
    %368 = arith.index_cast %367 : i32 to index
    %c0_100 = arith.constant 0 : index
    %369 = vector.load %arg9[%c0_99, %368, %c0_100] : memref<2x48x96xf32, #tpu.memory_space<vmem>>, vector<1x8x96xf32>
    %370 = vector.shape_cast %369 : vector<1x8x96xf32> to vector<8x96xf32>
    %cst_101 = arith.constant dense<0.000000e+00> : vector<8x96xf32>
    %371 = tpu.matmul %331, %22, %cst_101 {dimension_numbers = #tpu.dot_dimension_numbers<[1], [0], [0], [1], [0, 0, 1, 1], [], []>} : vector<8x32xf32>, vector<32x96xf32>, vector<8x96xf32> -> vector<8x96xf32>
    %372 = vector.extract_strided_slice %370 {offsets = [0, 0], sizes = [8, 64], strides = [1, 1]} : vector<8x96xf32> to vector<8x64xf32>
    %373 = vector.extract_strided_slice %371 {offsets = [0, 0], sizes = [8, 64], strides = [1, 1]} : vector<8x96xf32> to vector<8x64xf32>
    %374 = arith.addf %372, %373 : vector<8x64xf32>
    %375 = arith.negf %374 : vector<8x64xf32>
    %376 = math.exp %375 : vector<8x64xf32>
    %cst_102 = arith.constant 1.000000e+00 : f32
    %377 = vector.broadcast %cst_102 : f32 to vector<8x64xf32>
    %378 = arith.addf %377, %376 : vector<8x64xf32>
    %379 = arith.divf %377, %378 : vector<8x64xf32>
    %380 = vector.extract_strided_slice %379 {offsets = [0, 0], sizes = [8, 32], strides = [1, 1]} : vector<8x64xf32> to vector<8x32xf32>
    %381 = vector.extract_strided_slice %379 {offsets = [0, 32], sizes = [8, 32], strides = [1, 1]} : vector<8x64xf32> to vector<8x32xf32>
    %382 = vector.extract_strided_slice %370 {offsets = [0, 64], sizes = [8, 32], strides = [1, 1]} : vector<8x96xf32> to vector<8x32xf32>
    %383 = vector.extract_strided_slice %371 {offsets = [0, 64], sizes = [8, 32], strides = [1, 1]} : vector<8x96xf32> to vector<8x32xf32>
    %384 = vector.broadcast %26 : vector<1x32xf32> to vector<8x32xf32>
    %385 = arith.addf %383, %384 : vector<8x32xf32>
    %386 = arith.mulf %380, %385 : vector<8x32xf32>
    %387 = arith.addf %382, %386 : vector<8x32xf32>
    %388 = math.tanh %387 : vector<8x32xf32>
    %cst_103 = arith.constant 1.000000e+00 : f32
    %389 = vector.broadcast %cst_103 : f32 to vector<8x32xf32>
    %390 = arith.subf %389, %381 : vector<8x32xf32>
    %391 = arith.mulf %390, %388 : vector<8x32xf32>
    %392 = arith.mulf %381, %331 : vector<8x32xf32>
    %393 = arith.addf %391, %392 : vector<8x32xf32>
    %394 = vector.broadcast %c5_i32_97 : i32 to vector<8x1xi32>
    %395 = arith.cmpi slt, %394, %29 : vector<8x1xi32>
    %396 = vector.shape_cast %395 : vector<8x1xi1> to vector<8x1xi1>
    %397 = vector.broadcast %396 : vector<8x1xi1> to vector<8x32xi1>
    %398 = arith.select %397, %393, %331 : vector<8x32xi1>, vector<8x32xf32>
    %c5_i32_104 = arith.constant 5 : i32
    %399 = arith.subi %c5_i32_104, %c5_i32_97 : i32
    %c8_i32_105 = arith.constant 8 : i32
    %400 = arith.muli %399, %c8_i32_105 : i32
    %401 = tpu.assume_multiple %400, 8 : i32
    %c1_106 = arith.constant 1 : index
    %402 = arith.index_cast %401 : i32 to index
    %c0_107 = arith.constant 0 : index
    %403 = vector.load %arg9[%c1_106, %402, %c0_107] : memref<2x48x96xf32, #tpu.memory_space<vmem>>, vector<1x8x96xf32>
    %404 = vector.shape_cast %403 : vector<1x8x96xf32> to vector<8x96xf32>
    %cst_108 = arith.constant dense<0.000000e+00> : vector<8x96xf32>
    %405 = tpu.matmul %365, %24, %cst_108 {dimension_numbers = #tpu.dot_dimension_numbers<[1], [0], [0], [1], [0, 0, 1, 1], [], []>} : vector<8x32xf32>, vector<32x96xf32>, vector<8x96xf32> -> vector<8x96xf32>
    %406 = vector.extract_strided_slice %404 {offsets = [0, 0], sizes = [8, 64], strides = [1, 1]} : vector<8x96xf32> to vector<8x64xf32>
    %407 = vector.extract_strided_slice %405 {offsets = [0, 0], sizes = [8, 64], strides = [1, 1]} : vector<8x96xf32> to vector<8x64xf32>
    %408 = arith.addf %406, %407 : vector<8x64xf32>
    %409 = arith.negf %408 : vector<8x64xf32>
    %410 = math.exp %409 : vector<8x64xf32>
    %cst_109 = arith.constant 1.000000e+00 : f32
    %411 = vector.broadcast %cst_109 : f32 to vector<8x64xf32>
    %412 = arith.addf %411, %410 : vector<8x64xf32>
    %413 = arith.divf %411, %412 : vector<8x64xf32>
    %414 = vector.extract_strided_slice %413 {offsets = [0, 0], sizes = [8, 32], strides = [1, 1]} : vector<8x64xf32> to vector<8x32xf32>
    %415 = vector.extract_strided_slice %413 {offsets = [0, 32], sizes = [8, 32], strides = [1, 1]} : vector<8x64xf32> to vector<8x32xf32>
    %416 = vector.extract_strided_slice %404 {offsets = [0, 64], sizes = [8, 32], strides = [1, 1]} : vector<8x96xf32> to vector<8x32xf32>
    %417 = vector.extract_strided_slice %405 {offsets = [0, 64], sizes = [8, 32], strides = [1, 1]} : vector<8x96xf32> to vector<8x32xf32>
    %418 = vector.broadcast %28 : vector<1x32xf32> to vector<8x32xf32>
    %419 = arith.addf %417, %418 : vector<8x32xf32>
    %420 = arith.mulf %414, %419 : vector<8x32xf32>
    %421 = arith.addf %416, %420 : vector<8x32xf32>
    %422 = math.tanh %421 : vector<8x32xf32>
    %cst_110 = arith.constant 1.000000e+00 : f32
    %423 = vector.broadcast %cst_110 : f32 to vector<8x32xf32>
    %424 = arith.subf %423, %415 : vector<8x32xf32>
    %425 = arith.mulf %424, %422 : vector<8x32xf32>
    %426 = arith.mulf %415, %365 : vector<8x32xf32>
    %427 = arith.addf %425, %426 : vector<8x32xf32>
    %428 = vector.broadcast %399 : i32 to vector<8x1xi32>
    %429 = arith.cmpi slt, %428, %29 : vector<8x1xi32>
    %430 = vector.shape_cast %429 : vector<8x1xi1> to vector<8x1xi1>
    %431 = vector.broadcast %430 : vector<8x1xi1> to vector<8x32xi1>
    %432 = arith.select %431, %427, %365 : vector<8x32xi1>, vector<8x32xf32>
    %c6_i32 = arith.constant 6 : i32
    %c0_111 = arith.constant 0 : index
    %c0_112 = arith.constant 0 : index
    %c0_113 = arith.constant 0 : index
    %433 = vector.load %arg6[%c0_111, %c0_112, %c0_113] : memref<2x32x128xf32, #tpu.memory_space<vmem>>, vector<1x32x128xf32>
    %434 = vector.shape_cast %433 : vector<1x32x128xf32> to vector<32x128xf32>
    %cst_114 = arith.constant dense<0.000000e+00> : vector<8x128xf32>
    %435 = tpu.matmul %432, %434, %cst_114 {dimension_numbers = #tpu.dot_dimension_numbers<[1], [0], [0], [1], [0, 0, 1, 1], [], []>} : vector<8x32xf32>, vector<32x128xf32>, vector<8x128xf32> -> vector<8x128xf32>
    %c1_115 = arith.constant 1 : index
    %c0_116 = arith.constant 0 : index
    %c0_117 = arith.constant 0 : index
    %436 = vector.load %arg6[%c1_115, %c0_116, %c0_117] : memref<2x32x128xf32, #tpu.memory_space<vmem>>, vector<1x32x128xf32>
    %437 = vector.shape_cast %436 : vector<1x32x128xf32> to vector<32x128xf32>
    %cst_118 = arith.constant dense<0.000000e+00> : vector<8x128xf32>
    %438 = tpu.matmul %398, %437, %cst_118 {dimension_numbers = #tpu.dot_dimension_numbers<[1], [0], [0], [1], [0, 0, 1, 1], [], []>} : vector<8x32xf32>, vector<32x128xf32>, vector<8x128xf32> -> vector<8x128xf32>
    %439 = arith.addf %435, %438 : vector<8x128xf32>
    %c0_119 = arith.constant 0 : index
    %c0_120 = arith.constant 0 : index
    %440 = vector.load %arg7[%c0_119, %c0_120] : memref<1x128xf32, #tpu.memory_space<vmem>>, vector<1x128xf32>
    %441 = vector.broadcast %440 : vector<1x128xf32> to vector<8x128xf32>
    %442 = arith.addf %439, %441 : vector<8x128xf32>
    %c0_121 = arith.constant 0 : index
    %c0_122 = arith.constant 0 : index
    %443 = vector.load %arg8[%c0_121, %c0_122] : memref<8x128xf32, #tpu.memory_space<vmem>>, vector<8x128xf32>
    tpu.vector_store %arg8[%c0_121, %c0_122], %442 {strides = array<i32>} : memref<8x128xf32, #tpu.memory_space<vmem>>, vector<8x128xf32>,
    return
  }
}

</mosaic_0001>

<llo_original>
// kernel: tpu_custom_call.1
$region0: #{tpu_custom_call.1}
  #allocation0 [shape = 'u32[]', space=smem, size = 0x4, offset = 0x4, fixed_abs, tag = 'smem constant byte address 0x4 - core index']
  #allocation1 [shape = 'u32[72,128]{1,0:T(1,128)}', space=vmem, size = 0x9000, scoped, tag = 'internal scratch']
  #allocation2 [shape = 'f32[2,48,96]{2,1,0:T(8,128)}', space=vmem, size = 0xc000, scoped, tag = 'scratch operand']
  %s0 = inlined_call_operand.vmem [shape: f32[48,32], index: 0, kind: input, shape index: {}]
  %s1 = inlined_call_operand.vmem [shape: s32[8,1], index: 1, kind: input, shape index: {}]
  %s2 = inlined_call_operand.vmem [shape: f32[2,32,96], index: 2, kind: input, shape index: {}]
  %s3 = inlined_call_operand.hbm [shape: f32[2,32,96], index: 3, kind: input, shape index: {}]
  %s4 = inlined_call_operand.vmem [shape: f32[2,1,96], index: 4, kind: input, shape index: {}]
  %s5 = inlined_call_operand.vmem [shape: f32[2,1,32], index: 5, kind: input, shape index: {}]
  %s6 = inlined_call_operand.hbm [shape: f32[2,32,128], index: 6, kind: input, shape index: {}]
  %s7 = inlined_call_operand.vmem [shape: f32[1,128], index: 7, kind: input, shape index: {}]
  %s8 = inlined_call_operand.hbm [shape: f32[8,128], index: 8, kind: output, shape index: {}]
  %s9 = sld [smem:[#allocation0]]
  $region50: #{tpu_custom_call.1} parent=0
    _
  %s11 = ssub.s32 1, %s9
  %s12 = scalar_select 0, %s11, %s9
  $region1: #{tpu_custom_call.1} parent=0
    #allocation3 [shape = 'u8[32768]{0}', space=vmem, size = 0x8000, scoped, tag = 'input window, operand 3, single buffered']
    #allocation4 [shape = 's32[1]{0}', space=sflag, size = 0x4, scoped, tag = 'scoped memory for tpu_custom_call.1']
    #allocation5 [shape = 's32[1]{0}', space=sflag, size = 0x4, scoped, tag = 'scoped memory for tpu_custom_call.1']
    #allocation6 [shape = 'u8[32768]{0}', space=vmem, size = 0x8000, scoped, tag = 'input window, operand 6, single buffered']
    #allocation7 [shape = 's32[1]{0}', space=sflag, size = 0x4, scoped, tag = 'scoped memory for tpu_custom_call.1']
    #allocation8 [shape = 'u8[4096]{0}', space=vmem, size = 0x1000, scoped, tag = 'output window, operand 0, single buffered']
    %13 = vsyncpa [#allocation4], 0
    %14 = vsyncpa [#allocation7], 0
    %15 = vsyncpa [#allocation5], 0
    // Predicated region
    $region2: #{tpu_custom_call.1} parent=1 // pred_check
      _
    $region3: #{tpu_custom_call.1} parent=1 // pred_check_branch
      %17 = sbr.rel (0) target = $region5
    $region4: #{tpu_custom_call.1} parent=1 // pred_region
      _
    $region5: #{tpu_custom_call.1} parent=1 // pred_fallthru
      _
    // Predicated region
    $region6: #{tpu_custom_call.1} parent=1 // pred_check
      _
    $region7: #{tpu_custom_call.1} parent=1 // pred_check_branch
      %19 = sbr.rel (0) target = $region9
    $region8: #{tpu_custom_call.1} parent=1 // pred_region
      _
    $region9: #{tpu_custom_call.1} parent=1 // pred_fallthru
      _
    // Predicated region
    $region10: #{tpu_custom_call.1} parent=1 // pred_check
      _
    $region11: #{tpu_custom_call.1} parent=1 // pred_check_branch
      %21 = sbr.rel (0) target = $region13
    $region12: #{tpu_custom_call.1} parent=1 // pred_region
      _
    $region13: #{tpu_custom_call.1} parent=1 // pred_fallthru
      _
    // Predicated region
    $region14: #{tpu_custom_call.1} parent=1 // pred_check
      _
    $region15: #{tpu_custom_call.1} parent=1 // pred_check_branch
      %23 = sbr.rel (0) target = $region17
    $region16: #{tpu_custom_call.1} parent=1 // pred_region
      %25 = vsyncadd [#allocation4], 0
      %s26 = sshll.u32 %s3, 4
      %s27 = int_to_ptr.hbm [resolvable:$true] %s26
      %s28 = sshll.u32 [#allocation3], 4
      %s29 = int_to_ptr.vmem [resolvable:$true] %s28
      %34 = dma.hbm_to_vmem [thread:$0]  %s27, 1024, %s29, [#allocation4], 128, 128, 8
    $region17: #{tpu_custom_call.1} parent=1 // pred_fallthru
      _
    // Predicated region
    $region18: #{tpu_custom_call.1} parent=1 // pred_check
      _
    $region19: #{tpu_custom_call.1} parent=1 // pred_check_branch
      %36 = sbr.rel (0) target = $region21
    $region20: #{tpu_custom_call.1} parent=1 // pred_region
      _
    $region21: #{tpu_custom_call.1} parent=1 // pred_fallthru
      _
    // Predicated region
    $region22: #{tpu_custom_call.1} parent=1 // pred_check
      _
    $region23: #{tpu_custom_call.1} parent=1 // pred_check_branch
      %38 = sbr.rel (0) target = $region25
    $region24: #{tpu_custom_call.1} parent=1 // pred_region
      _
    $region25: #{tpu_custom_call.1} parent=1 // pred_fallthru
      _
    // Predicated region
    $region26: #{tpu_custom_call.1} parent=1 // pred_check
      _
    $region27: #{tpu_custom_call.1} parent=1 // pred_check_branch
      %40 = sbr.rel (0) target = $region29
    $region28: #{tpu_custom_call.1} parent=1 // pred_region
      %42 = vsyncadd [#allocation7], 0
      %s43 = sshll.u32 %s6, 4
      %s44 = int_to_ptr.hbm [resolvable:$true] %s43
      %s45 = sshll.u32 [#allocation6], 4
      %s46 = int_to_ptr.vmem [resolvable:$true] %s45
      %51 = dma.hbm_to_vmem [thread:$0]  %s44, 1024, %s46, [#allocation7], 128, 128, 8
    $region29: #{tpu_custom_call.1} parent=1 // pred_fallthru
      _
    // Predicated region
    $region30: #{tpu_custom_call.1} parent=1 // pred_check
      _
    $region31: #{tpu_custom_call.1} parent=1 // pred_check_branch
      %53 = sbr.rel (0) target = $region33
    $region32: #{tpu_custom_call.1} parent=1 // pred_region
      _
    $region33: #{tpu_custom_call.1} parent=1 // pred_fallthru
      _
    // Predicated region
    $region34: #{tpu_custom_call.1} parent=1 // pred_check
      _
    $region35: #{tpu_custom_call.1} parent=1 // pred_check_branch
      %55 = sbr.rel (0) target = $region37
    $region36: #{tpu_custom_call.1} parent=1 // pred_region
      %57 = dma.done [#allocation4], 1024
    $region37: #{tpu_custom_call.1} parent=1 // pred_fallthru
      _
    // Predicated region
    $region38: #{tpu_custom_call.1} parent=1 // pred_check
      _
    $region39: #{tpu_custom_call.1} parent=1 // pred_check_branch
      %59 = sbr.rel (0) target = $region41
    $region40: #{tpu_custom_call.1} parent=1 // pred_region
      %61 = dma.done [#allocation7], 1024
    $region41: #{tpu_custom_call.1} parent=1 // pred_fallthru
      _
    %v62 = vld [vmem:[%s0] sm:$0xff]
    %v63 = vld [vmem:[%s0 + $0x8] sm:$0xff]
    %v64 = vld [vmem:[%s0 + $0x10] sm:$0xff]
    %v65 = vld [vmem:[%s0 + $0x18] sm:$0xff]
    %v66 = vld [vmem:[%s0 + $0x20] sm:$0xff]
    %v67 = vld [vmem:[%s0 + $0x28] sm:$0xff]
    %v68 = vld [vmem:[%s2] sm:$0xff]
    %v69 = vld [vmem:[%s2 + $0x8] sm:$0xff]
    %v70 = vld [vmem:[%s2 + $0x10] sm:$0xff]
    %v71 = vld [vmem:[%s2 + $0x18] sm:$0xff]
    %v72 = vld [vmem:[%s4] sm:$0x1]
    %v74 = vperm.slane %v72, 0
    %vm76 = vcmask 261120
    %v78 = vsel %vm76, %v62, 0
    %v81 = vsel %vm76, %v63, 0
    %v84 = vsel %vm76, %v64, 0
    %v87 = vsel %vm76, %v65, 0
    %v90 = vsel %vm76, %v66, 0
    %v93 = vsel %vm76, %v67, 0
    %95 = vmatpush.msra.mxu0 0.0
    %96 = vmatpush.msra.mxu0 0.0
    %97 = vmatpush.msra.mxu0 0.0
    %98 = vmatpush.msra.mxu0 0.0
    %99 = vmatpush.msra.mxu0 0.0
    %100 = vmatpush.msra.mxu0 0.0
    %101 = vmatpush.msra.mxu0 0.0
    %102 = vmatpush.msra.mxu0 0.0
    %103 = vmatpush.msra.mxu0 0.0
    %104 = vmatpush.msra.mxu0 0.0
    %105 = vmatpush.msra.mxu0 0.0
    %106 = vmatpush.msra.mxu0 0.0
    %107 = vmatpush.msra.mxu0 %v71
    %108 = vmatpush.msra.mxu0 %v70
    %109 = vmatpush.msra.mxu0 %v69
    %110 = vmatpush.msra.mxu0 %v68
    %111 = vmatmul.f32.gmra.mxu0 %v78
    %v112 = vpop.f32.mrf.mxu0
    %v113 = vadd.f32 %v74, %v112
    %114 = vmatmul.f32.gmra.mxu0 %v81
    %v115 = vpop.f32.mrf.mxu0
    %v116 = vadd.f32 %v74, %v115
    %117 = vmatmul.f32.gmra.mxu0 %v84
    %v118 = vpop.f32.mrf.mxu0
    %v119 = vadd.f32 %v74, %v118
    %120 = vmatmul.f32.gmra.mxu0 %v87
    %v121 = vpop.f32.mrf.mxu0
    %v122 = vadd.f32 %v74, %v121
    %123 = vmatmul.f32.gmra.mxu0 %v90
    %v124 = vpop.f32.mrf.mxu0
    %v125 = vadd.f32 %v74, %v124
    %126 = vmatmul.f32.gmra.mxu0 %v93
    %v127 = vpop.f32.mrf.mxu0
    %v128 = vadd.f32 %v74, %v127
    %129 = vdwg.mxu0
    %vm130 = vcmask 785408
    %131 = vst.msk [vmem:[#allocation2] sm:$0xff] %vm130, %v113
    %132 = vst.msk [vmem:[#allocation2 + $0x8] sm:$0xff] %vm130, %v116
    %133 = vst.msk [vmem:[#allocation2 + $0x10] sm:$0xff] %vm130, %v119
    %134 = vst.msk [vmem:[#allocation2 + $0x18] sm:$0xff] %vm130, %v122
    %135 = vst.msk [vmem:[#allocation2 + $0x20] sm:$0xff] %vm130, %v125
    %136 = vst.msk [vmem:[#allocation2 + $0x28] sm:$0xff] %vm130, %v128
    %s137 = scalar_lea.vmem %s2, 32
    %v138 = vld [vmem:[%s137] sm:$0xff]
    %v139 = vld [vmem:[%s137 + $0x8] sm:$0xff]
    %v140 = vld [vmem:[%s137 + $0x10] sm:$0xff]
    %v141 = vld [vmem:[%s137 + $0x18] sm:$0xff]
    %s142 = scalar_lea.vmem %s4, 1
    %v143 = vld [vmem:[%s142] sm:$0x1]
    %v145 = vperm.slane %v143, 0
    %147 = vmatpush.msra.mxu0 0.0
    %148 = vmatpush.msra.mxu0 0.0
    %149 = vmatpush.msra.mxu0 0.0
    %150 = vmatpush.msra.mxu0 0.0
    %151 = vmatpush.msra.mxu0 0.0
    %152 = vmatpush.msra.mxu0 0.0
    %153 = vmatpush.msra.mxu0 0.0
    %154 = vmatpush.msra.mxu0 0.0
    %155 = vmatpush.msra.mxu0 0.0
    %156 = vmatpush.msra.mxu0 0.0
    %157 = vmatpush.msra.mxu0 0.0
    %158 = vmatpush.msra.mxu0 0.0
    %159 = vmatpush.msra.mxu0 %v141
    %160 = vmatpush.msra.mxu0 %v140
    %161 = vmatpush.msra.mxu0 %v139
    %162 = vmatpush.msra.mxu0 %v138
    %163 = vmatmul.f32.gmra.mxu0 %v78
    %v164 = vpop.f32.mrf.mxu0
    %v165 = vadd.f32 %v145, %v164
    %166 = vmatmul.f32.gmra.mxu0 %v81
    %v167 = vpop.f32.mrf.mxu0
    %v168 = vadd.f32 %v145, %v167
    %169 = vmatmul.f32.gmra.mxu0 %v84
    %v170 = vpop.f32.mrf.mxu0
    %v171 = vadd.f32 %v145, %v170
    %172 = vmatmul.f32.gmra.mxu0 %v87
    %v173 = vpop.f32.mrf.mxu0
    %v174 = vadd.f32 %v145, %v173
    %175 = vmatmul.f32.gmra.mxu0 %v90
    %v176 = vpop.f32.mrf.mxu0
    %v177 = vadd.f32 %v145, %v176
    %178 = vmatmul.f32.gmra.mxu0 %v93
    %v179 = vpop.f32.mrf.mxu0
    %v180 = vadd.f32 %v145, %v179
    %181 = vdwg.mxu0
    %s182 = scalar_lea.vmem [#allocation2], 48
    %183 = vst.msk [vmem:[%s182] sm:$0xff] %vm130, %v165
    %184 = vst.msk [vmem:[%s182 + $0x8] sm:$0xff] %vm130, %v168
    %185 = vst.msk [vmem:[%s182 + $0x10] sm:$0xff] %vm130, %v171
    %186 = vst.msk [vmem:[%s182 + $0x18] sm:$0xff] %vm130, %v174
    %187 = vst.msk [vmem:[%s182 + $0x20] sm:$0xff] %vm130, %v177
    %188 = vst.msk [vmem:[%s182 + $0x28] sm:$0xff] %vm130, %v180
    %v189 = vld [vmem:[#allocation3] sm:$0xff]
    %v190 = vld [vmem:[#allocation3 + $0x8] sm:$0xff]
    %v191 = vld [vmem:[#allocation3 + $0x10] sm:$0xff]
    %v192 = vld [vmem:[#allocation3 + $0x18] sm:$0xff]
    %s193 = scalar_lea.vmem [#allocation3], 32
    %v194 = vld [vmem:[%s193] sm:$0xff]
    %v195 = vld [vmem:[%s193 + $0x8] sm:$0xff]
    %v196 = vld [vmem:[%s193 + $0x10] sm:$0xff]
    %v197 = vld [vmem:[%s193 + $0x18] sm:$0xff]
    %v198 = vld [vmem:[%s5] sm:$0x1]
    %s199 = scalar_lea.vmem %s5, 1
    %v200 = vld [vmem:[%s199] sm:$0x1]
    %v201 = vld [vmem:[%s1] sm:$0xff]
    %v202 = vld [vmem:[#allocation2] sm:$0xff]
    %v204 = vsel %vm76, 0.0, 0
    %206 = vmatpush.msra.mxu0 0.0
    %207 = vmatpush.msra.mxu0 0.0
    %208 = vmatpush.msra.mxu0 0.0
    %209 = vmatpush.msra.mxu0 0.0
    %210 = vmatpush.msra.mxu0 0.0
    %211 = vmatpush.msra.mxu0 0.0
    %212 = vmatpush.msra.mxu0 0.0
    %213 = vmatpush.msra.mxu0 0.0
    %214 = vmatpush.msra.mxu0 0.0
    %215 = vmatpush.msra.mxu0 0.0
    %216 = vmatpush.msra.mxu0 0.0
    %217 = vmatpush.msra.mxu0 0.0
    %218 = vmatpush.msra.mxu0 %v192
    %219 = vmatpush.msra.mxu0 %v191
    %220 = vmatpush.msra.mxu0 %v190
    %221 = vmatpush.msra.mxu0 %v189
    %222 = vmatmul.f32.gmra.mxu0 %v204
    %v223 = vpop.f32.mrf.mxu0
    %v224 = vadd.f32 0.0, %v223
    %225 = vdwg.mxu0
    %v226 = vadd.f32 %v202, %v224
    %v227 = vxor.u32 %v226, 2147483648
    %v228 = vmul.f32 %v227, 1.442695
    %v229 = vpow.pop %v228
    %v230 = vadd.f32 %v229, 1.0
    %v231 = vrcp.pop %v230
    %v232 = vmul.f32 %v230, %v231
    %v233 = vsub.f32 1.0, %v232
    %v234 = vmul.f32 %v231, %v233
    %v235 = vadd.f32 %v231, %v234
    %vm236 = vweird.f32 %v230
    %vm237 = vweird.f32 %v231
    %vm238 = vmor %vm236, %vm237
    %v239 = vsel %vm238, %v231, %v235
    %v240 = vand.u32 2147483647, %v230
    %vm241 = vcmp.eq.f32.partialorder %v240, 8.507059e+37
    %v242 = vand.u32 %v230, 2147483648
    %v243 = vor.u32 1.1754944e-38, %v242
    %v244 = vsel %vm241, %v243, %v239
    %v245 = vmul.f32 1.0, %v244
    %v247 = vperm.slane %v198, 0
    %248 = vrot.lane.b32.xlu0 %v247, 64
    %v249 = vpop.permute.xlu0 %248
    %v251 = vadd.f32 %v224, %v249
    %253 = vrot.lane.b32.xlu0 %v251, 64
    %v254 = vpop.permute.xlu0 %253
    %v256 = vmul.f32 %v245, %v254
    %258 = vrot.lane.b32.xlu0 %v256, 64
    %v259 = vpop.permute.xlu0 %258
    %v261 = vadd.f32 %v202, %v259
    %v262 = vtanh.pop %v261
    %v263 = vsub.f32 1.0, %v245
    %265 = vrot.lane.b32.xlu0 %v262, 96
    %v266 = vpop.permute.xlu0 %265
    %v268 = vmul.f32 %v263, %v266
    %v269 = vmul.f32 %v245, 0.0
    %v270 = vadd.f32 %v268, %v269
    %vm271 = vcmp.gt.s32.totalorder %v201, 0
    %v272 = vsel %vm271, 1, 0
    %273 = vset.pattern.permute.xlu0 0
    %274 = vperm.xlu0 %273, %v272
    %v275 = vpop.permute.xlu0 %274
    %vm276 = vcmp.eq.s32.totalorder %v275, 1
    %v277 = vsel %vm276, %v270, 0.0
    %s278 = sadd.s32 40, 48
    %s279 = scalar_lea.vmem [#allocation2], %s278
    %v280 = vld [vmem:[%s279] sm:$0xff]
    %281 = vmatpush.msra.mxu0 0.0
    %282 = vmatpush.msra.mxu0 0.0
    %283 = vmatpush.msra.mxu0 0.0
    %284 = vmatpush.msra.mxu0 0.0
    %285 = vmatpush.msra.mxu0 0.0
    %286 = vmatpush.msra.mxu0 0.0
    %287 = vmatpush.msra.mxu0 0.0
    %288 = vmatpush.msra.mxu0 0.0
    %289 = vmatpush.msra.mxu0 0.0
    %290 = vmatpush.msra.mxu0 0.0
    %291 = vmatpush.msra.mxu0 0.0
    %292 = vmatpush.msra.mxu0 0.0
    %293 = vmatpush.msra.mxu0 %v197
    %294 = vmatpush.msra.mxu0 %v196
    %295 = vmatpush.msra.mxu0 %v195
    %296 = vmatpush.msra.mxu0 %v194
    %297 = vmatmul.f32.gmra.mxu0 %v204
    %v298 = vpop.f32.mrf.mxu0
    %v299 = vadd.f32 0.0, %v298
    %300 = vdwg.mxu0
    %v301 = vadd.f32 %v280, %v299
    %v302 = vxor.u32 %v301, 2147483648
    %v303 = vmul.f32 %v302, 1.442695
    %v304 = vpow.pop %v303
    %v305 = vadd.f32 %v304, 1.0
    %v306 = vrcp.pop %v305
    %v307 = vmul.f32 %v305, %v306
    %v308 = vsub.f32 1.0, %v307
    %v309 = vmul.f32 %v306, %v308
    %v310 = vadd.f32 %v306, %v309
    %vm311 = vweird.f32 %v305
    %vm312 = vweird.f32 %v306
    %vm313 = vmor %vm311, %vm312
    %v314 = vsel %vm313, %v306, %v310
    %v315 = vand.u32 2147483647, %v305
    %vm316 = vcmp.eq.f32.partialorder %v315, 8.507059e+37
    %v317 = vand.u32 %v305, 2147483648
    %v318 = vor.u32 1.1754944e-38, %v317
    %v319 = vsel %vm316, %v318, %v314
    %v320 = vmul.f32 1.0, %v319
    %v322 = vperm.slane %v200, 0
    %323 = vrot.lane.b32.xlu0 %v322, 64
    %v324 = vpop.permute.xlu0 %323
    %v326 = vadd.f32 %v299, %v324
    %328 = vrot.lane.b32.xlu0 %v326, 64
    %v329 = vpop.permute.xlu0 %328
    %v331 = vmul.f32 %v320, %v329
    %333 = vrot.lane.b32.xlu0 %v331, 64
    %v334 = vpop.permute.xlu0 %333
    %v336 = vadd.f32 %v280, %v334
    %v337 = vtanh.pop %v336
    %v338 = vsub.f32 1.0, %v320
    %340 = vrot.lane.b32.xlu0 %v337, 96
    %v341 = vpop.permute.xlu0 %340
    %v343 = vmul.f32 %v338, %v341
    %v344 = vmul.f32 %v320, 0.0
    %v345 = vadd.f32 %v343, %v344
    %vm346 = vcmp.gt.s32.totalorder %v201, 5
    %v347 = vsel %vm346, 1, 0
    %348 = vset.pattern.permute.xlu0 0
    %349 = vperm.xlu0 %348, %v347
    %v350 = vpop.permute.xlu0 %349
    %vm351 = vcmp.eq.s32.totalorder %v350, 1
    %v352 = vsel %vm351, %v345, 0.0
    %s353 = scalar_lea.vmem [#allocation2], 8
    %v354 = vld [vmem:[%s353] sm:$0xff]
    %356 = vrot.lane.b32.xlu0 %v277, 96
    %v357 = vpop.permute.xlu0 %356
    %v358 = vsel %vm76, %v357, 0
    %360 = vmatpush.msra.mxu0 0.0
    %361 = vmatpush.msra.mxu0 0.0
    %362 = vmatpush.msra.mxu0 0.0
    %363 = vmatpush.msra.mxu0 0.0
    %364 = vmatpush.msra.mxu0 0.0
    %365 = vmatpush.msra.mxu0 0.0
    %366 = vmatpush.msra.mxu0 0.0
    %367 = vmatpush.msra.mxu0 0.0
    %368 = vmatpush.msra.mxu0 0.0
    %369 = vmatpush.msra.mxu0 0.0
    %370 = vmatpush.msra.mxu0 0.0
    %371 = vmatpush.msra.mxu0 0.0
    %372 = vmatpush.msra.mxu0 %v192
    %373 = vmatpush.msra.mxu0 %v191
    %374 = vmatpush.msra.mxu0 %v190
    %375 = vmatpush.msra.mxu0 %v189
    %376 = vmatmul.f32.gmra.mxu0 %v358
    %v377 = vpop.f32.mrf.mxu0
    %v378 = vadd.f32 0.0, %v377
    %379 = vdwg.mxu0
    %v380 = vadd.f32 %v354, %v378
    %v381 = vxor.u32 %v380, 2147483648
    %v382 = vmul.f32 %v381, 1.442695
    %v383 = vpow.pop %v382
    %v384 = vadd.f32 %v383, 1.0
    %v385 = vrcp.pop %v384
    %v386 = vmul.f32 %v384, %v385
    %v387 = vsub.f32 1.0, %v386
    %v388 = vmul.f32 %v385, %v387
    %v389 = vadd.f32 %v385, %v388
    %vm390 = vweird.f32 %v384
    %vm391 = vweird.f32 %v385
    %vm392 = vmor %vm390, %vm391
    %v393 = vsel %vm392, %v385, %v389
    %v394 = vand.u32 2147483647, %v384
    %vm395 = vcmp.eq.f32.partialorder %v394, 8.507059e+37
    %v396 = vand.u32 %v384, 2147483648
    %v397 = vor.u32 1.1754944e-38, %v396
    %v398 = vsel %vm395, %v397, %v393
    %v399 = vmul.f32 1.0, %v398
    %v400 = vadd.f32 %v378, %v249
    %402 = vrot.lane.b32.xlu0 %v400, 64
    %v403 = vpop.permute.xlu0 %402
    %v405 = vmul.f32 %v399, %v403
    %407 = vrot.lane.b32.xlu0 %v405, 64
    %v408 = vpop.permute.xlu0 %407
    %v410 = vadd.f32 %v354, %v408
    %v411 = vtanh.pop %v410
    %v412 = vsub.f32 1.0, %v399
    %414 = vrot.lane.b32.xlu0 %v411, 96
    %v415 = vpop.permute.xlu0 %414
    %v417 = vmul.f32 %v412, %v415
    %v418 = vmul.f32 %v399, %v277
    %v419 = vadd.f32 %v417, %v418
    %vm420 = vcmp.gt.s32.totalorder %v201, 1
    %v421 = vsel %vm420, 1, 0
    %422 = vset.pattern.permute.xlu0 0
    %423 = vperm.xlu0 %422, %v421
    %v424 = vpop.permute.xlu0 %423
    %vm425 = vcmp.eq.s32.totalorder %v424, 1
    %v426 = vsel %vm425, %v419, %v277
    %s427 = sadd.s32 32, 48
    %s428 = scalar_lea.vmem [#allocation2], %s427
    %v429 = vld [vmem:[%s428] sm:$0xff]
    %431 = vrot.lane.b32.xlu0 %v352, 96
    %v432 = vpop.permute.xlu0 %431
    %v433 = vsel %vm76, %v432, 0
    %435 = vmatpush.msra.mxu0 0.0
    %436 = vmatpush.msra.mxu0 0.0
    %437 = vmatpush.msra.mxu0 0.0
    %438 = vmatpush.msra.mxu0 0.0
    %439 = vmatpush.msra.mxu0 0.0
    %440 = vmatpush.msra.mxu0 0.0
    %441 = vmatpush.msra.mxu0 0.0
    %442 = vmatpush.msra.mxu0 0.0
    %443 = vmatpush.msra.mxu0 0.0
    %444 = vmatpush.msra.mxu0 0.0
    %445 = vmatpush.msra.mxu0 0.0
    %446 = vmatpush.msra.mxu0 0.0
    %447 = vmatpush.msra.mxu0 %v197
    %448 = vmatpush.msra.mxu0 %v196
    %449 = vmatpush.msra.mxu0 %v195
    %450 = vmatpush.msra.mxu0 %v194
    %451 = vmatmul.f32.gmra.mxu0 %v433
    %v452 = vpop.f32.mrf.mxu0
    %v453 = vadd.f32 0.0, %v452
    %454 = vdwg.mxu0
    %v455 = vadd.f32 %v429, %v453
    %v456 = vxor.u32 %v455, 2147483648
    %v457 = vmul.f32 %v456, 1.442695
    %v458 = vpow.pop %v457
    %v459 = vadd.f32 %v458, 1.0
    %v460 = vrcp.pop %v459
    %v461 = vmul.f32 %v459, %v460
    %v462 = vsub.f32 1.0, %v461
    %v463 = vmul.f32 %v460, %v462
    %v464 = vadd.f32 %v460, %v463
    %vm465 = vweird.f32 %v459
    %vm466 = vweird.f32 %v460
    %vm467 = vmor %vm465, %vm466
    %v468 = vsel %vm467, %v460, %v464
    %v469 = vand.u32 2147483647, %v459
    %vm470 = vcmp.eq.f32.partialorder %v469, 8.507059e+37
    %v471 = vand.u32 %v459, 2147483648
    %v472 = vor.u32 1.1754944e-38, %v471
    %v473 = vsel %vm470, %v472, %v468
    %v474 = vmul.f32 1.0, %v473
    %v475 = vadd.f32 %v453, %v324
    %477 = vrot.lane.b32.xlu0 %v475, 64
    %v478 = vpop.permute.xlu0 %477
    %v480 = vmul.f32 %v474, %v478
    %482 = vrot.lane.b32.xlu0 %v480, 64
    %v483 = vpop.permute.xlu0 %482
    %v485 = vadd.f32 %v429, %v483
    %v486 = vtanh.pop %v485
    %v487 = vsub.f32 1.0, %v474
    %489 = vrot.lane.b32.xlu0 %v486, 96
    %v490 = vpop.permute.xlu0 %489
    %v492 = vmul.f32 %v487, %v490
    %v493 = vmul.f32 %v474, %v352
    %v494 = vadd.f32 %v492, %v493
    %vm495 = vcmp.gt.s32.totalorder %v201, 4
    %v496 = vsel %vm495, 1, 0
    %497 = vset.pattern.permute.xlu0 0
    %498 = vperm.xlu0 %497, %v496
    %v499 = vpop.permute.xlu0 %498
    %vm500 = vcmp.eq.s32.totalorder %v499, 1
    %v501 = vsel %vm500, %v494, %v352
    %s502 = scalar_lea.vmem [#allocation2], 16
    %v503 = vld [vmem:[%s502] sm:$0xff]
    %505 = vrot.lane.b32.xlu0 %v426, 96
    %v506 = vpop.permute.xlu0 %505
    %v507 = vsel %vm76, %v506, 0
    %509 = vmatpush.msra.mxu0 0.0
    %510 = vmatpush.msra.mxu0 0.0
    %511 = vmatpush.msra.mxu0 0.0
    %512 = vmatpush.msra.mxu0 0.0
    %513 = vmatpush.msra.mxu0 0.0
    %514 = vmatpush.msra.mxu0 0.0
    %515 = vmatpush.msra.mxu0 0.0
    %516 = vmatpush.msra.mxu0 0.0
    %517 = vmatpush.msra.mxu0 0.0
    %518 = vmatpush.msra.mxu0 0.0
    %519 = vmatpush.msra.mxu0 0.0
    %520 = vmatpush.msra.mxu0 0.0
    %521 = vmatpush.msra.mxu0 %v192
    %522 = vmatpush.msra.mxu0 %v191
    %523 = vmatpush.msra.mxu0 %v190
    %524 = vmatpush.msra.mxu0 %v189
    %525 = vmatmul.f32.gmra.mxu0 %v507
    %v526 = vpop.f32.mrf.mxu0
    %v527 = vadd.f32 0.0, %v526
    %528 = vdwg.mxu0
    %v529 = vadd.f32 %v503, %v527
    %v530 = vxor.u32 %v529, 2147483648
    %v531 = vmul.f32 %v530, 1.442695
    %v532 = vpow.pop %v531
    %v533 = vadd.f32 %v532, 1.0
    %v534 = vrcp.pop %v533
    %v535 = vmul.f32 %v533, %v534
    %v536 = vsub.f32 1.0, %v535
    %v537 = vmul.f32 %v534, %v536
    %v538 = vadd.f32 %v534, %v537
    %vm539 = vweird.f32 %v533
    %vm540 = vweird.f32 %v534
    %vm541 = vmor %vm539, %vm540
    %v542 = vsel %vm541, %v534, %v538
    %v543 = vand.u32 2147483647, %v533
    %vm544 = vcmp.eq.f32.partialorder %v543, 8.507059e+37
    %v545 = vand.u32 %v533, 2147483648
    %v546 = vor.u32 1.1754944e-38, %v545
    %v547 = vsel %vm544, %v546, %v542
    %v548 = vmul.f32 1.0, %v547
    %v549 = vadd.f32 %v527, %v249
    %551 = vrot.lane.b32.xlu0 %v549, 64
    %v552 = vpop.permute.xlu0 %551
    %v554 = vmul.f32 %v548, %v552
    %556 = vrot.lane.b32.xlu0 %v554, 64
    %v557 = vpop.permute.xlu0 %556
    %v559 = vadd.f32 %v503, %v557
    %v560 = vtanh.pop %v559
    %v561 = vsub.f32 1.0, %v548
    %563 = vrot.lane.b32.xlu0 %v560, 96
    %v564 = vpop.permute.xlu0 %563
    %v566 = vmul.f32 %v561, %v564
    %v567 = vmul.f32 %v548, %v426
    %v568 = vadd.f32 %v566, %v567
    %vm569 = vcmp.gt.s32.totalorder %v201, 2
    %v570 = vsel %vm569, 1, 0
    %571 = vset.pattern.permute.xlu0 0
    %572 = vperm.xlu0 %571, %v570
    %v573 = vpop.permute.xlu0 %572
    %vm574 = vcmp.eq.s32.totalorder %v573, 1
    %v575 = vsel %vm574, %v568, %v426
    %s576 = sadd.s32 24, 48
    %s577 = scalar_lea.vmem [#allocation2], %s576
    %v578 = vld [vmem:[%s577] sm:$0xff]
    %580 = vrot.lane.b32.xlu0 %v501, 96
    %v581 = vpop.permute.xlu0 %580
    %v582 = vsel %vm76, %v581, 0
    %584 = vmatpush.msra.mxu0 0.0
    %585 = vmatpush.msra.mxu0 0.0
    %586 = vmatpush.msra.mxu0 0.0
    %587 = vmatpush.msra.mxu0 0.0
    %588 = vmatpush.msra.mxu0 0.0
    %589 = vmatpush.msra.mxu0 0.0
    %590 = vmatpush.msra.mxu0 0.0
    %591 = vmatpush.msra.mxu0 0.0
    %592 = vmatpush.msra.mxu0 0.0
    %593 = vmatpush.msra.mxu0 0.0
    %594 = vmatpush.msra.mxu0 0.0
    %595 = vmatpush.msra.mxu0 0.0
    %596 = vmatpush.msra.mxu0 %v197
    %597 = vmatpush.msra.mxu0 %v196
    %598 = vmatpush.msra.mxu0 %v195
    %599 = vmatpush.msra.mxu0 %v194
    %600 = vmatmul.f32.gmra.mxu0 %v582
    %v601 = vpop.f32.mrf.mxu0
    %v602 = vadd.f32 0.0, %v601
    %603 = vdwg.mxu0
    %v604 = vadd.f32 %v578, %v602
    %v605 = vxor.u32 %v604, 2147483648
    %v606 = vmul.f32 %v605, 1.442695
    %v607 = vpow.pop %v606
    %v608 = vadd.f32 %v607, 1.0
    %v609 = vrcp.pop %v608
    %v610 = vmul.f32 %v608, %v609
    %v611 = vsub.f32 1.0, %v610
    %v612 = vmul.f32 %v609, %v611
    %v613 = vadd.f32 %v609, %v612
    %vm614 = vweird.f32 %v608
    %vm615 = vweird.f32 %v609
    %vm616 = vmor %vm614, %vm615
    %v617 = vsel %vm616, %v609, %v613
    %v618 = vand.u32 2147483647, %v608
    %vm619 = vcmp.eq.f32.partialorder %v618, 8.507059e+37
    %v620 = vand.u32 %v608, 2147483648
    %v621 = vor.u32 1.1754944e-38, %v620
    %v622 = vsel %vm619, %v621, %v617
    %v623 = vmul.f32 1.0, %v622
    %v624 = vadd.f32 %v602, %v324
    %626 = vrot.lane.b32.xlu0 %v624, 64
    %v627 = vpop.permute.xlu0 %626
    %v629 = vmul.f32 %v623, %v627
    %631 = vrot.lane.b32.xlu0 %v629, 64
    %v632 = vpop.permute.xlu0 %631
    %v634 = vadd.f32 %v578, %v632
    %v635 = vtanh.pop %v634
    %v636 = vsub.f32 1.0, %v623
    %638 = vrot.lane.b32.xlu0 %v635, 96
    %v639 = vpop.permute.xlu0 %638
    %v641 = vmul.f32 %v636, %v639
    %v642 = vmul.f32 %v623, %v501
    %v643 = vadd.f32 %v641, %v642
    %vm644 = vcmp.gt.s32.totalorder %v201, 3
    %v645 = vsel %vm644, 1, 0
    %646 = vset.pattern.permute.xlu0 0
    %647 = vperm.xlu0 %646, %v645
    %v648 = vpop.permute.xlu0 %647
    %vm649 = vcmp.eq.s32.totalorder %v648, 1
    %v650 = vsel %vm649, %v643, %v501
    %s651 = scalar_lea.vmem [#allocation2], 24
    %v652 = vld [vmem:[%s651] sm:$0xff]
    %654 = vrot.lane.b32.xlu0 %v575, 96
    %v655 = vpop.permute.xlu0 %654
    %v656 = vsel %vm76, %v655, 0
    %658 = vmatpush.msra.mxu0 0.0
    %659 = vmatpush.msra.mxu0 0.0
    %660 = vmatpush.msra.mxu0 0.0
    %661 = vmatpush.msra.mxu0 0.0
    %662 = vmatpush.msra.mxu0 0.0
    %663 = vmatpush.msra.mxu0 0.0
    %664 = vmatpush.msra.mxu0 0.0
    %665 = vmatpush.msra.mxu0 0.0
    %666 = vmatpush.msra.mxu0 0.0
    %667 = vmatpush.msra.mxu0 0.0
    %668 = vmatpush.msra.mxu0 0.0
    %669 = vmatpush.msra.mxu0 0.0
    %670 = vmatpush.msra.mxu0 %v192
    %671 = vmatpush.msra.mxu0 %v191
    %672 = vmatpush.msra.mxu0 %v190
    %673 = vmatpush.msra.mxu0 %v189
    %674 = vmatmul.f32.gmra.mxu0 %v656
    %v675 = vpop.f32.mrf.mxu0
    %v676 = vadd.f32 0.0, %v675
    %677 = vdwg.mxu0
    %v678 = vadd.f32 %v652, %v676
    %v679 = vxor.u32 %v678, 2147483648
    %v680 = vmul.f32 %v679, 1.442695
    %v681 = vpow.pop %v680
    %v682 = vadd.f32 %v681, 1.0
    %v683 = vrcp.pop %v682
    %v684 = vmul.f32 %v682, %v683
    %v685 = vsub.f32 1.0, %v684
    %v686 = vmul.f32 %v683, %v685
    %v687 = vadd.f32 %v683, %v686
    %vm688 = vweird.f32 %v682
    %vm689 = vweird.f32 %v683
    %vm690 = vmor %vm688, %vm689
    %v691 = vsel %vm690, %v683, %v687
    %v692 = vand.u32 2147483647, %v682
    %vm693 = vcmp.eq.f32.partialorder %v692, 8.507059e+37
    %v694 = vand.u32 %v682, 2147483648
    %v695 = vor.u32 1.1754944e-38, %v694
    %v696 = vsel %vm693, %v695, %v691
    %v697 = vmul.f32 1.0, %v696
    %v698 = vadd.f32 %v676, %v249
    %700 = vrot.lane.b32.xlu0 %v698, 64
    %v701 = vpop.permute.xlu0 %700
    %v703 = vmul.f32 %v697, %v701
    %705 = vrot.lane.b32.xlu0 %v703, 64
    %v706 = vpop.permute.xlu0 %705
    %v708 = vadd.f32 %v652, %v706
    %v709 = vtanh.pop %v708
    %v710 = vsub.f32 1.0, %v697
    %712 = vrot.lane.b32.xlu0 %v709, 96
    %v713 = vpop.permute.xlu0 %712
    %v715 = vmul.f32 %v710, %v713
    %v716 = vmul.f32 %v697, %v575
    %v717 = vadd.f32 %v715, %v716
    %v718 = vsel %vm649, %v717, %v575
    %s719 = sadd.s32 16, 48
    %s720 = scalar_lea.vmem [#allocation2], %s719
    %v721 = vld [vmem:[%s720] sm:$0xff]
    %723 = vrot.lane.b32.xlu0 %v650, 96
    %v724 = vpop.permute.xlu0 %723
    %v725 = vsel %vm76, %v724, 0
    %727 = vmatpush.msra.mxu0 0.0
    %728 = vmatpush.msra.mxu0 0.0
    %729 = vmatpush.msra.mxu0 0.0
    %730 = vmatpush.msra.mxu0 0.0
    %731 = vmatpush.msra.mxu0 0.0
    %732 = vmatpush.msra.mxu0 0.0
    %733 = vmatpush.msra.mxu0 0.0
    %734 = vmatpush.msra.mxu0 0.0
    %735 = vmatpush.msra.mxu0 0.0
    %736 = vmatpush.msra.mxu0 0.0
    %737 = vmatpush.msra.mxu0 0.0
    %738 = vmatpush.msra.mxu0 0.0
    %739 = vmatpush.msra.mxu0 %v197
    %740 = vmatpush.msra.mxu0 %v196
    %741 = vmatpush.msra.mxu0 %v195
    %742 = vmatpush.msra.mxu0 %v194
    %743 = vmatmul.f32.gmra.mxu0 %v725
    %v744 = vpop.f32.mrf.mxu0
    %v745 = vadd.f32 0.0, %v744
    %746 = vdwg.mxu0
    %v747 = vadd.f32 %v721, %v745
    %v748 = vxor.u32 %v747, 2147483648
    %v749 = vmul.f32 %v748, 1.442695
    %v750 = vpow.pop %v749
    %v751 = vadd.f32 %v750, 1.0
    %v752 = vrcp.pop %v751
    %v753 = vmul.f32 %v751, %v752
    %v754 = vsub.f32 1.0, %v753
    %v755 = vmul.f32 %v752, %v754
    %v756 = vadd.f32 %v752, %v755
    %vm757 = vweird.f32 %v751
    %vm758 = vweird.f32 %v752
    %vm759 = vmor %vm757, %vm758
    %v760 = vsel %vm759, %v752, %v756
    %v761 = vand.u32 2147483647, %v751
    %vm762 = vcmp.eq.f32.partialorder %v761, 8.507059e+37
    %v763 = vand.u32 %v751, 2147483648
    %v764 = vor.u32 1.1754944e-38, %v763
    %v765 = vsel %vm762, %v764, %v760
    %v766 = vmul.f32 1.0, %v765
    %v767 = vadd.f32 %v745, %v324
    %769 = vrot.lane.b32.xlu0 %v767, 64
    %v770 = vpop.permute.xlu0 %769
    %v772 = vmul.f32 %v766, %v770
    %774 = vrot.lane.b32.xlu0 %v772, 64
    %v775 = vpop.permute.xlu0 %774
    %v777 = vadd.f32 %v721, %v775
    %v778 = vtanh.pop %v777
    %v779 = vsub.f32 1.0, %v766
    %781 = vrot.lane.b32.xlu0 %v778, 96
    %v782 = vpop.permute.xlu0 %781
    %v784 = vmul.f32 %v779, %v782
    %v785 = vmul.f32 %v766, %v650
    %v786 = vadd.f32 %v784, %v785
    %v787 = vsel %vm574, %v786, %v650
    %s788 = scalar_lea.vmem [#allocation2], 32
    %v789 = vld [vmem:[%s788] sm:$0xff]
    %791 = vrot.lane.b32.xlu0 %v718, 96
    %v792 = vpop.permute.xlu0 %791
    %v793 = vsel %vm76, %v792, 0
    %795 = vmatpush.msra.mxu0 0.0
    %796 = vmatpush.msra.mxu0 0.0
    %797 = vmatpush.msra.mxu0 0.0
    %798 = vmatpush.msra.mxu0 0.0
    %799 = vmatpush.msra.mxu0 0.0
    %800 = vmatpush.msra.mxu0 0.0
    %801 = vmatpush.msra.mxu0 0.0
    %802 = vmatpush.msra.mxu0 0.0
    %803 = vmatpush.msra.mxu0 0.0
    %804 = vmatpush.msra.mxu0 0.0
    %805 = vmatpush.msra.mxu0 0.0
    %806 = vmatpush.msra.mxu0 0.0
    %807 = vmatpush.msra.mxu0 %v192
    %808 = vmatpush.msra.mxu0 %v191
    %809 = vmatpush.msra.mxu0 %v190
    %810 = vmatpush.msra.mxu0 %v189
    %811 = vmatmul.f32.gmra.mxu0 %v793
    %v812 = vpop.f32.mrf.mxu0
    %v813 = vadd.f32 0.0, %v812
    %814 = vdwg.mxu0
    %v815 = vadd.f32 %v789, %v813
    %v816 = vxor.u32 %v815, 2147483648
    %v817 = vmul.f32 %v816, 1.442695
    %v818 = vpow.pop %v817
    %v819 = vadd.f32 %v818, 1.0
    %v820 = vrcp.pop %v819
    %v821 = vmul.f32 %v819, %v820
    %v822 = vsub.f32 1.0, %v821
    %v823 = vmul.f32 %v820, %v822
    %v824 = vadd.f32 %v820, %v823
    %vm825 = vweird.f32 %v819
    %vm826 = vweird.f32 %v820
    %vm827 = vmor %vm825, %vm826
    %v828 = vsel %vm827, %v820, %v824
    %v829 = vand.u32 2147483647, %v819
    %vm830 = vcmp.eq.f32.partialorder %v829, 8.507059e+37
    %v831 = vand.u32 %v819, 2147483648
    %v832 = vor.u32 1.1754944e-38, %v831
    %v833 = vsel %vm830, %v832, %v828
    %v834 = vmul.f32 1.0, %v833
    %v835 = vadd.f32 %v813, %v249
    %837 = vrot.lane.b32.xlu0 %v835, 64
    %v838 = vpop.permute.xlu0 %837
    %v840 = vmul.f32 %v834, %v838
    %842 = vrot.lane.b32.xlu0 %v840, 64
    %v843 = vpop.permute.xlu0 %842
    %v845 = vadd.f32 %v789, %v843
    %v846 = vtanh.pop %v845
    %v847 = vsub.f32 1.0, %v834
    %849 = vrot.lane.b32.xlu0 %v846, 96
    %v850 = vpop.permute.xlu0 %849
    %v852 = vmul.f32 %v847, %v850
    %v853 = vmul.f32 %v834, %v718
    %v854 = vadd.f32 %v852, %v853
    %v855 = vsel %vm500, %v854, %v718
    %s856 = sadd.s32 8, 48
    %s857 = scalar_lea.vmem [#allocation2], %s856
    %v858 = vld [vmem:[%s857] sm:$0xff]
    %860 = vrot.lane.b32.xlu0 %v787, 96
    %v861 = vpop.permute.xlu0 %860
    %v862 = vsel %vm76, %v861, 0
    %864 = vmatpush.msra.mxu0 0.0
    %865 = vmatpush.msra.mxu0 0.0
    %866 = vmatpush.msra.mxu0 0.0
    %867 = vmatpush.msra.mxu0 0.0
    %868 = vmatpush.msra.mxu0 0.0
    %869 = vmatpush.msra.mxu0 0.0
    %870 = vmatpush.msra.mxu0 0.0
    %871 = vmatpush.msra.mxu0 0.0
    %872 = vmatpush.msra.mxu0 0.0
    %873 = vmatpush.msra.mxu0 0.0
    %874 = vmatpush.msra.mxu0 0.0
    %875 = vmatpush.msra.mxu0 0.0
    %876 = vmatpush.msra.mxu0 %v197
    %877 = vmatpush.msra.mxu0 %v196
    %878 = vmatpush.msra.mxu0 %v195
    %879 = vmatpush.msra.mxu0 %v194
    %880 = vmatmul.f32.gmra.mxu0 %v862
    %v881 = vpop.f32.mrf.mxu0
    %v882 = vadd.f32 0.0, %v881
    %883 = vdwg.mxu0
    %v884 = vadd.f32 %v858, %v882
    %v885 = vxor.u32 %v884, 2147483648
    %v886 = vmul.f32 %v885, 1.442695
    %v887 = vpow.pop %v886
    %v888 = vadd.f32 %v887, 1.0
    %v889 = vrcp.pop %v888
    %v890 = vmul.f32 %v888, %v889
    %v891 = vsub.f32 1.0, %v890
    %v892 = vmul.f32 %v889, %v891
    %v893 = vadd.f32 %v889, %v892
    %vm894 = vweird.f32 %v888
    %vm895 = vweird.f32 %v889
    %vm896 = vmor %vm894, %vm895
    %v897 = vsel %vm896, %v889, %v893
    %v898 = vand.u32 2147483647, %v888
    %vm899 = vcmp.eq.f32.partialorder %v898, 8.507059e+37
    %v900 = vand.u32 %v888, 2147483648
    %v901 = vor.u32 1.1754944e-38, %v900
    %v902 = vsel %vm899, %v901, %v897
    %v903 = vmul.f32 1.0, %v902
    %v904 = vadd.f32 %v882, %v324
    %906 = vrot.lane.b32.xlu0 %v904, 64
    %v907 = vpop.permute.xlu0 %906
    %v909 = vmul.f32 %v903, %v907
    %911 = vrot.lane.b32.xlu0 %v909, 64
    %v912 = vpop.permute.xlu0 %911
    %v914 = vadd.f32 %v858, %v912
    %v915 = vtanh.pop %v914
    %v916 = vsub.f32 1.0, %v903
    %918 = vrot.lane.b32.xlu0 %v915, 96
    %v919 = vpop.permute.xlu0 %918
    %v921 = vmul.f32 %v916, %v919
    %v922 = vmul.f32 %v903, %v787
    %v923 = vadd.f32 %v921, %v922
    %v924 = vsel %vm425, %v923, %v787
    %s925 = scalar_lea.vmem [#allocation2], 40
    %v926 = vld [vmem:[%s925] sm:$0xff]
    %928 = vrot.lane.b32.xlu0 %v855, 96
    %v929 = vpop.permute.xlu0 %928
    %v930 = vsel %vm76, %v929, 0
    %932 = vmatpush.msra.mxu0 0.0
    %933 = vmatpush.msra.mxu0 0.0
    %934 = vmatpush.msra.mxu0 0.0
    %935 = vmatpush.msra.mxu0 0.0
    %936 = vmatpush.msra.mxu0 0.0
    %937 = vmatpush.msra.mxu0 0.0
    %938 = vmatpush.msra.mxu0 0.0
    %939 = vmatpush.msra.mxu0 0.0
    %940 = vmatpush.msra.mxu0 0.0
    %941 = vmatpush.msra.mxu0 0.0
    %942 = vmatpush.msra.mxu0 0.0
    %943 = vmatpush.msra.mxu0 0.0
    %944 = vmatpush.msra.mxu0 %v192
    %945 = vmatpush.msra.mxu0 %v191
    %946 = vmatpush.msra.mxu0 %v190
    %947 = vmatpush.msra.mxu0 %v189
    %948 = vmatmul.f32.gmra.mxu0 %v930
    %v949 = vpop.f32.mrf.mxu0
    %v950 = vadd.f32 0.0, %v949
    %951 = vdwg.mxu0
    %v952 = vadd.f32 %v926, %v950
    %v953 = vxor.u32 %v952, 2147483648
    %v954 = vmul.f32 %v953, 1.442695
    %v955 = vpow.pop %v954
    %v956 = vadd.f32 %v955, 1.0
    %v957 = vrcp.pop %v956
    %v958 = vmul.f32 %v956, %v957
    %v959 = vsub.f32 1.0, %v958
    %v960 = vmul.f32 %v957, %v959
    %v961 = vadd.f32 %v957, %v960
    %vm962 = vweird.f32 %v956
    %vm963 = vweird.f32 %v957
    %vm964 = vmor %vm962, %vm963
    %v965 = vsel %vm964, %v957, %v961
    %v966 = vand.u32 2147483647, %v956
    %vm967 = vcmp.eq.f32.partialorder %v966, 8.507059e+37
    %v968 = vand.u32 %v956, 2147483648
    %v969 = vor.u32 1.1754944e-38, %v968
    %v970 = vsel %vm967, %v969, %v965
    %v971 = vmul.f32 1.0, %v970
    %v972 = vadd.f32 %v950, %v249
    %974 = vrot.lane.b32.xlu0 %v972, 64
    %v975 = vpop.permute.xlu0 %974
    %v977 = vmul.f32 %v971, %v975
    %979 = vrot.lane.b32.xlu0 %v977, 64
    %v980 = vpop.permute.xlu0 %979
    %v982 = vadd.f32 %v926, %v980
    %v983 = vtanh.pop %v982
    %v984 = vsub.f32 1.0, %v971
    %986 = vrot.lane.b32.xlu0 %v983, 96
    %v987 = vpop.permute.xlu0 %986
    %v989 = vmul.f32 %v984, %v987
    %v990 = vmul.f32 %v971, %v855
    %v991 = vadd.f32 %v989, %v990
    %v992 = vsel %vm351, %v991, %v855
    %s993 = sadd.s32 0, 48
    %s994 = scalar_lea.vmem [#allocation2], %s993
    %v995 = vld [vmem:[%s994] sm:$0xff]
    %997 = vrot.lane.b32.xlu0 %v924, 96
    %v998 = vpop.permute.xlu0 %997
    %v999 = vsel %vm76, %v998, 0
    %1001 = vmatpush.msra.mxu0 0.0
    %1002 = vmatpush.msra.mxu0 0.0
    %1003 = vmatpush.msra.mxu0 0.0
    %1004 = vmatpush.msra.mxu0 0.0
    %1005 = vmatpush.msra.mxu0 0.0
    %1006 = vmatpush.msra.mxu0 0.0
    %1007 = vmatpush.msra.mxu0 0.0
    %1008 = vmatpush.msra.mxu0 0.0
    %1009 = vmatpush.msra.mxu0 0.0
    %1010 = vmatpush.msra.mxu0 0.0
    %1011 = vmatpush.msra.mxu0 0.0
    %1012 = vmatpush.msra.mxu0 0.0
    %1013 = vmatpush.msra.mxu0 %v197
    %1014 = vmatpush.msra.mxu0 %v196
    %1015 = vmatpush.msra.mxu0 %v195
    %1016 = vmatpush.msra.mxu0 %v194
    %1017 = vmatmul.f32.gmra.mxu0 %v999
    %v1018 = vpop.f32.mrf.mxu0
    %v1019 = vadd.f32 0.0, %v1018
    %1020 = vdwg.mxu0
    %v1021 = vadd.f32 %v995, %v1019
    %v1022 = vxor.u32 %v1021, 2147483648
    %v1023 = vmul.f32 %v1022, 1.442695
    %v1024 = vpow.pop %v1023
    %v1025 = vadd.f32 %v1024, 1.0
    %v1026 = vrcp.pop %v1025
    %v1027 = vmul.f32 %v1025, %v1026
    %v1028 = vsub.f32 1.0, %v1027
    %v1029 = vmul.f32 %v1026, %v1028
    %v1030 = vadd.f32 %v1026, %v1029
    %vm1031 = vweird.f32 %v1025
    %vm1032 = vweird.f32 %v1026
    %vm1033 = vmor %vm1031, %vm1032
    %v1034 = vsel %vm1033, %v1026, %v1030
    %v1035 = vand.u32 2147483647, %v1025
    %vm1036 = vcmp.eq.f32.partialorder %v1035, 8.507059e+37
    %v1037 = vand.u32 %v1025, 2147483648
    %v1038 = vor.u32 1.1754944e-38, %v1037
    %v1039 = vsel %vm1036, %v1038, %v1034
    %v1040 = vmul.f32 1.0, %v1039
    %v1041 = vadd.f32 %v1019, %v324
    %1043 = vrot.lane.b32.xlu0 %v1041, 64
    %v1044 = vpop.permute.xlu0 %1043
    %v1046 = vmul.f32 %v1040, %v1044
    %1048 = vrot.lane.b32.xlu0 %v1046, 64
    %v1049 = vpop.permute.xlu0 %1048
    %v1051 = vadd.f32 %v995, %v1049
    %v1052 = vtanh.pop %v1051
    %v1053 = vsub.f32 1.0, %v1040
    %1055 = vrot.lane.b32.xlu0 %v1052, 96
    %v1056 = vpop.permute.xlu0 %1055
    %v1058 = vmul.f32 %v1053, %v1056
    %v1059 = vmul.f32 %v1040, %v924
    %v1060 = vadd.f32 %v1058, %v1059
    %v1061 = vsel %vm276, %v1060, %v924
    %v1062 = vld [vmem:[#allocation6] sm:$0xff]
    %v1063 = vld [vmem:[#allocation6 + $0x8] sm:$0xff]
    %v1064 = vld [vmem:[#allocation6 + $0x10] sm:$0xff]
    %v1065 = vld [vmem:[#allocation6 + $0x18] sm:$0xff]
    %s1066 = scalar_lea.vmem [#allocation6], 32
    %v1067 = vld [vmem:[%s1066] sm:$0xff]
    %v1068 = vld [vmem:[%s1066 + $0x8] sm:$0xff]
    %v1069 = vld [vmem:[%s1066 + $0x10] sm:$0xff]
    %v1070 = vld [vmem:[%s1066 + $0x18] sm:$0xff]
    %1072 = vrot.lane.b32.xlu0 %v992, 96
    %v1073 = vpop.permute.xlu0 %1072
    %v1074 = vsel %vm76, %v1073, 0
    %1076 = vmatpush.msra.mxu0 0.0
    %1077 = vmatpush.msra.mxu0 0.0
    %1078 = vmatpush.msra.mxu0 0.0
    %1079 = vmatpush.msra.mxu0 0.0
    %1080 = vmatpush.msra.mxu0 0.0
    %1081 = vmatpush.msra.mxu0 0.0
    %1082 = vmatpush.msra.mxu0 0.0
    %1083 = vmatpush.msra.mxu0 0.0
    %1084 = vmatpush.msra.mxu0 0.0
    %1085 = vmatpush.msra.mxu0 0.0
    %1086 = vmatpush.msra.mxu0 0.0
    %1087 = vmatpush.msra.mxu0 0.0
    %1088 = vmatpush.msra.mxu0 %v1070
    %1089 = vmatpush.msra.mxu0 %v1069
    %1090 = vmatpush.msra.mxu0 %v1068
    %1091 = vmatpush.msra.mxu0 %v1067
    %1092 = vmatmul.f32.gmra.mxu0 %v1074
    %v1093 = vpop.f32.mrf.mxu0
    %v1094 = vadd.f32 0.0, %v1093
    %1095 = vdwg.mxu0
    %1097 = vrot.lane.b32.xlu0 %v1061, 96
    %v1098 = vpop.permute.xlu0 %1097
    %v1099 = vsel %vm76, %v1098, 0
    %1101 = vmatpush.msra.mxu0 0.0
    %1102 = vmatpush.msra.mxu0 0.0
    %1103 = vmatpush.msra.mxu0 0.0
    %1104 = vmatpush.msra.mxu0 0.0
    %1105 = vmatpush.msra.mxu0 0.0
    %1106 = vmatpush.msra.mxu0 0.0
    %1107 = vmatpush.msra.mxu0 0.0
    %1108 = vmatpush.msra.mxu0 0.0
    %1109 = vmatpush.msra.mxu0 0.0
    %1110 = vmatpush.msra.mxu0 0.0
    %1111 = vmatpush.msra.mxu0 0.0
    %1112 = vmatpush.msra.mxu0 0.0
    %1113 = vmatpush.msra.mxu0 %v1065
    %1114 = vmatpush.msra.mxu0 %v1064
    %1115 = vmatpush.msra.mxu0 %v1063
    %1116 = vmatpush.msra.mxu0 %v1062
    %1117 = vmatmul.f32.gmra.mxu0 %v1099
    %v1118 = vpop.f32.mrf.mxu0
    %v1119 = vadd.f32 %v1094, %v1118
    %1120 = vdwg.mxu0
    %v1121 = vld [vmem:[%s7] sm:$0x1]
    %v1123 = vperm.slane %v1121, 0
    %v1125 = vadd.f32 %v1119, %v1123
    %1126 = vst [vmem:[#allocation8] sm:$0xff] %v1125
    // Predicated region
    $region42: #{tpu_custom_call.1} parent=1 // pred_check
      _
    $region43: #{tpu_custom_call.1} parent=1 // pred_check_branch
      %1128 = sbr.rel (0) target = $region45
    $region44: #{tpu_custom_call.1} parent=1 // pred_region
      %1130 = vsyncadd [#allocation5], 0
      %s1132 = sshll.u32 [#allocation8], 4
      %s1133 = int_to_ptr.vmem [resolvable:$true] %s1132
      %s1134 = sshll.u32 %s8, 4
      %s1135 = int_to_ptr.hbm [resolvable:$true] %s1134
      %1137 = dma.vmem_to_hbm [thread:$0]  %s1133, 128, %s1135, [#allocation5]
    $region45: #{tpu_custom_call.1} parent=1 // pred_fallthru
      _
    // Predicated region
    $region46: #{tpu_custom_call.1} parent=1 // pred_check
      _
    $region47: #{tpu_custom_call.1} parent=1 // pred_check_branch
      %1139 = sbr.rel (0) target = $region49
    $region48: #{tpu_custom_call.1} parent=1 // pred_region
      %1141 = dma.done [#allocation5], 128
    $region49: #{tpu_custom_call.1} parent=1 // pred_fallthru
      _
    %1142 = vsyncpa [#allocation4], 1
    %1143 = vsyncpa [#allocation7], 1
    %1144 = vsyncpa [#allocation5], 1

</llo_original>
